<compile_context>
chip_gen: v6e
topology: v6e:2x2x1
jax: 0.10.0
libtpu: 0.0.40
codegen_flags: <defaults>
</compile_context>

<pallas_src>
import functools
import math

import jax
import jax.numpy as jnp
from jax.experimental import pallas as pl
from jax.experimental.pallas import tpu as pltpu

_NEG_FILL = -1000000000.0  # exact constant used by the PyTorch module


# ----------------------------------------------------------------------------
# Fused kernel: QKV projections + str_mat softmax + per-head attention +
# head-merge folded into the output projection. One grid step = Bt batches.
# ----------------------------------------------------------------------------
def _mh_inr_attn_kernel(x_ref, str_ref, mask_ref,
                        wq_ref, wk_ref, wv_ref, wo_ref,
                        bq_ref, bk_ref, bv_ref, bo_ref,
                        o_ref, *, n_head, use_bf16):
    bt, n, f = x_ref.shape
    d_h = f // n_head
    cdt = jnp.bfloat16 if use_bf16 else x_ref.dtype  # MXU operand dtype

    # (Bt, N, F) -> (Bt*N, F): leading-dim merge only (lane dim unchanged).
    x2 = x_ref[...].reshape(bt * n, f)

    def proj(w_ref, b_ref):
        y = jnp.dot(x2.astype(cdt), w_ref[...].astype(cdt),
                    preferred_element_type=jnp.float32)
        return y + b_ref[...]                                   # (Bt*N, F) f32

    q = proj(wq_ref, bq_ref)
    k = proj(wk_ref, bk_ref)
    v = proj(wv_ref, bv_ref)

    # --- softmax(masked str_mat): head-invariant, computed once per tile ----
    s0 = jnp.where(mask_ref[...] == 0.0, _NEG_FILL,
                   str_ref[...].astype(jnp.float32))            # (Bt, N, N)
    s0 = s0 - jnp.max(s0, axis=-1, keepdims=True)
    e0 = jnp.exp(s0)
    str_prob = e0 * pl.reciprocal(jnp.sum(e0, axis=-1, keepdims=True),
                                  approx=True)                  # (Bt, N, N)

    inv_scale = 1.0 / float(d_h)   # torch: scores / query.size(-1)
    wo = wo_ref[...]

    acc = None
    for h in range(n_head):        # static unrolled loop; n_head is small
        sl = slice(h * d_h, (h + 1) * d_h)
        q_h = q[:, sl].reshape(bt, n, d_h)
        k_h = k[:, sl].reshape(bt, n, d_h)
        v_h = v[:, sl].reshape(bt, n, d_h)

        # q . k^T with the transpose folded into dot_general (no explicit .T).
        s = jax.lax.dot_general(q_h.astype(cdt), k_h.astype(cdt),
                                dimension_numbers=(((2,), (2,)), ((0,), (0,))),
                                preferred_element_type=jnp.float32)
        s = s * inv_scale + str_prob                            # (Bt, N, N)
        # NOTE: torch's second `scores.masked_fill(...)` is non-inplace and its
        # result is discarded, so attn_mask does NOT re-mask the scores here.

        s = s - jnp.max(s, axis=-1, keepdims=True)
        e = jnp.exp(s)
        p = e * pl.reciprocal(jnp.sum(e, axis=-1, keepdims=True), approx=True)
        # dropout: identity (eval / deterministic).

        ctx = jax.lax.dot_general(p.astype(cdt), v_h.astype(cdt),
                                  dimension_numbers=(((2,), (1,)), ((0,), (0,))),
                                  preferred_element_type=jnp.float32)  # (Bt,N,d_h)

        # Head-merge transpose folded into the output projection:
        # merged[:, h*d_h:(h+1)*d_h] @ Wo[h*d_h:(h+1)*d_h, :].
        part = jnp.dot(ctx.reshape(bt * n, d_h).astype(cdt),
                       wo[sl, :].astype(cdt),
                       preferred_element_type=jnp.float32)      # (Bt*N, F)
        acc = part if acc is None else acc + part

    out = acc + bo_ref[...]
    o_ref[...] = out.reshape(bt, n, f).astype(o_ref.dtype)


# ----------------------------------------------------------------------------
# VMEM sizing helpers (feedback: explicit budget guard + raised scoped limit).
# ----------------------------------------------------------------------------
def _vmem_bytes_estimate(bt, n, f, n_head):
    fl = 4                                   # f32 bytes
    d_h = f // n_head
    dbl = 2                                  # pipeline double-buffering
    io = dbl * fl * (bt * n * f + 2 * bt * n * n + bt * n * f)
    weights = dbl * fl * 4 * (f * f + f)
    interm = fl * (4 * bt * n * f            # x2, q, k, v
                   + 4 * bt * n * n          # str_prob + per-head scores/exp/prob
                   + bt * n * d_h            # ctx
                   + 2 * bt * n * f)         # partial / accumulated output
    return io + weights + interm


def _pick_batch_tile(batch, n, f, n_head, budget=20 * 1024 * 1024):
    for bt in range(batch, 0, -1):
        if batch % bt == 0 and _vmem_bytes_estimate(bt, n, f, n_head) <= budget:
            return bt
    return 1


# ----------------------------------------------------------------------------
# Public wrapper mirroring MHInrAttn.forward(x, str_mat, attn_mask).
# params: dict with wq/wk/wv/wo of shape (F, F) (y = x @ W + b convention)
#         and bq/bk/bv/bo of shape (F,).
# ----------------------------------------------------------------------------
def mh_inr_attn(x, str_mat, attn_mask, params, n_head, *, use_bf16=False):
    B, N, F = x.shape
    assert F % n_head == 0, "features must be divisible by n_head"

    if attn_mask is None:
        attn_mask = jnp.ones((B, N, N), jnp.float32)
    str_mat = jnp.broadcast_to(str_mat, (B, N, N)).astype(jnp.float32)
    attn_mask = jnp.broadcast_to(attn_mask, (B, N, N)).astype(jnp.float32)

    bq = params["bq"].reshape(1, F)
    bk = params["bk"].reshape(1, F)
    bv = params["bv"].reshape(1, F)
    bo = params["bo"].reshape(1, F)

    bt = _pick_batch_tile(B, N, F, n_head)
    est = _vmem_bytes_estimate(bt, N, F, n_head)
    vmem_limit = int(min(max(2 * est, 32 * 1024 * 1024), 60 * 1024 * 1024))

    kern = functools.partial(_mh_inr_attn_kernel, n_head=n_head,
                             use_bf16=use_bf16)

    return pl.pallas_call(
        kern,
        out_shape=jax.ShapeDtypeStruct((B, N, F), x.dtype),
        grid_spec=pltpu.PrefetchScalarGridSpec(
            num_scalar_prefetch=0,
            grid=(B // bt,),
            in_specs=[
                pl.BlockSpec((bt, N, F), lambda b: (b, 0, 0)),   # x
                pl.BlockSpec((bt, N, N), lambda b: (b, 0, 0)),   # str_mat
                pl.BlockSpec((bt, N, N), lambda b: (b, 0, 0)),   # attn_mask
                pl.BlockSpec((F, F), lambda b: (0, 0)),          # Wq (resident)
                pl.BlockSpec((F, F), lambda b: (0, 0)),          # Wk
                pl.BlockSpec((F, F), lambda b: (0, 0)),          # Wv
                pl.BlockSpec((F, F), lambda b: (0, 0)),          # Wo
                pl.BlockSpec((1, F), lambda b: (0, 0)),          # bq
                pl.BlockSpec((1, F), lambda b: (0, 0)),          # bk
                pl.BlockSpec((1, F), lambda b: (0, 0)),          # bv
                pl.BlockSpec((1, F), lambda b: (0, 0)),          # bo
            ],
            out_specs=pl.BlockSpec((bt, N, F), lambda b: (b, 0, 0)),
        ),
        compiler_params=pltpu.CompilerParams(
            dimension_semantics=("parallel",),
            vmem_limit_bytes=vmem_limit),
    )(x, str_mat, attn_mask,
      params["wq"], params["wk"], params["wv"], params["wo"],
      bq, bk, bv, bo)


# ----------------------------------------------------------------------------
# Plain-JAX reference (same interpretation) for a sanity check.
# ----------------------------------------------------------------------------
def _reference(x, str_mat, attn_mask, params, n_head):
    B, N, F = x.shape
    d_h = F // n_head

    def heads(w, b):
        y = x @ w + b                                       # (B, N, F)
        return y.reshape(B, N, n_head, d_h).transpose(0, 2, 1, 3)

    q = heads(params["wq"], params["bq"])
    k = heads(params["wk"], params["bk"])
    v = heads(params["wv"], params["bv"])

    sm = jnp.where(attn_mask == 0.0, _NEG_FILL, str_mat)
    sm = jax.nn.softmax(sm, axis=-1)                        # (B, N, N)
    scores = jnp.einsum("bhnd,bhmd->bhnm", q, k) / d_h + sm[:, None]
    prob = jax.nn.softmax(scores, axis=-1)                  # dropout = identity
    ctx = jnp.einsum("bhnm,bhmd->bhnd", prob, v)
    merged = ctx.transpose(0, 2, 1, 3).reshape(B, N, F)
    return merged @ params["wo"] + params["bo"]


if __name__ == "__main__":
    key = jax.random.PRNGKey(0)
    keys = jax.random.split(key, 11)

    B, N, F, H = 2, 8, 32, 4          # batch, seq, features, heads (d_h = 8)
    scale = 1.0 / math.sqrt(F)

    x = jax.random.normal(keys[0], (B, N, F), jnp.float32)
    str_mat = jax.random.normal(keys[1], (B, N, N), jnp.float32)
    attn_mask = (jax.random.uniform(keys[2], (B, N, N)) > 0.25).astype(jnp.float32)

    params = dict(
        wq=jax.random.normal(keys[3], (F, F), jnp.float32) * scale,
        wk=jax.random.normal(keys[4], (F, F), jnp.float32) * scale,
        wv=jax.random.normal(keys[5], (F, F), jnp.float32) * scale,
        wo=jax.random.normal(keys[6], (F, F), jnp.float32) * scale,
        bq=jax.random.normal(keys[7], (F,), jnp.float32) * 0.1,
        bk=jax.random.normal(keys[8], (F,), jnp.float32) * 0.1,
        bv=jax.random.normal(keys[9], (F,), jnp.float32) * 0.1,
        bo=jax.random.normal(keys[10], (F,), jnp.float32) * 0.1,
    )

    # Default (precision-preserving f32 MXU) path.
    out = mh_inr_attn(x, str_mat, attn_mask, params, n_head=H)
    jax.block_until_ready(out)
    ref = _reference(x, str_mat, attn_mask, params, H)
    assert out.shape == (B, N, F)
    assert jnp.allclose(out, ref, atol=2e-2, rtol=2e-2), (
        f"max abs err {float(jnp.max(jnp.abs(out - ref)))}")

    # Optional bf16-operand path (f32 accumulation) — looser tolerance.
    out_bf16 = mh_inr_attn(x, str_mat, attn_mask, params, n_head=H,
                           use_bf16=True)
    jax.block_until_ready(out_bf16)
    assert jnp.allclose(out_bf16, ref, atol=1e-1, rtol=1e-1)

    print("KERNEL_OK")
</pallas_src>

<mosaic_0001>
module attributes {stable_mosaic.version = 11 : i64} {
  func.func @_mh_inr_attn_kernel(%arg0: i32, %arg1: memref<2x8x32xf32, #tpu.memory_space<vmem>>, %arg2: memref<2x8x8xf32, #tpu.memory_space<vmem>>, %arg3: memref<2x8x8xf32, #tpu.memory_space<vmem>>, %arg4: memref<32x32xf32, #tpu.memory_space<vmem>>, %arg5: memref<32x32xf32, #tpu.memory_space<vmem>>, %arg6: memref<32x32xf32, #tpu.memory_space<vmem>>, %arg7: memref<32x32xf32, #tpu.memory_space<vmem>>, %arg8: memref<1x32xf32, #tpu.memory_space<vmem>>, %arg9: memref<1x32xf32, #tpu.memory_space<vmem>>, %arg10: memref<1x32xf32, #tpu.memory_space<vmem>>, %arg11: memref<1x32xf32, #tpu.memory_space<vmem>>, %arg12: memref<2x8x32xf32, #tpu.memory_space<vmem>>) attributes {dimension_semantics = [#tpu.dimension_semantics<parallel>], iteration_bounds = array<i64: 1>, scalar_prefetch = 0 : i64, scratch_operands = 0 : i64, tpu.core_type = #tpu.core_type<tc>, window_params = [{transform_indices = @transform_0, window_bounds = array<i64: 2, 8, 32>}, {transform_indices = @transform_1, window_bounds = array<i64: 2, 8, 8>}, {transform_indices = @transform_2, window_bounds = array<i64: 2, 8, 8>}, {pipeline_mode = #tpu.pipeline_mode<synchronous>, transform_indices = @transform_3, window_bounds = array<i64: 32, 32>}, {pipeline_mode = #tpu.pipeline_mode<synchronous>, transform_indices = @transform_4, window_bounds = array<i64: 32, 32>}, {pipeline_mode = #tpu.pipeline_mode<synchronous>, transform_indices = @transform_5, window_bounds = array<i64: 32, 32>}, {pipeline_mode = #tpu.pipeline_mode<synchronous>, transform_indices = @transform_6, window_bounds = array<i64: 32, 32>}, {pipeline_mode = #tpu.pipeline_mode<synchronous>, transform_indices = @transform_7, window_bounds = array<i64: 1, 32>}, {pipeline_mode = #tpu.pipeline_mode<synchronous>, transform_indices = @transform_8, window_bounds = array<i64: 1, 32>}, {pipeline_mode = #tpu.pipeline_mode<synchronous>, transform_indices = @transform_9, window_bounds = array<i64: 1, 32>}, {pipeline_mode = #tpu.pipeline_mode<synchronous>, transform_indices = @transform_10, window_bounds = array<i64: 1, 32>}, {transform_indices = @transform_11, window_bounds = array<i64: 2, 8, 32>}]} {
    %c0 = arith.constant 0 : index
    %c0_0 = arith.constant 0 : index
    %c0_1 = arith.constant 0 : index
    %0 = vector.load %arg1[%c0, %c0_0, %c0_1] : memref<2x8x32xf32, #tpu.memory_space<vmem>>, vector<2x8x32xf32>
    %1 = vector.shape_cast %0 : vector<2x8x32xf32> to vector<16x32xf32>
    %c0_2 = arith.constant 0 : index
    %c0_3 = arith.constant 0 : index
    %2 = vector.load %arg4[%c0_2, %c0_3] : memref<32x32xf32, #tpu.memory_space<vmem>>, vector<32x32xf32>
    %cst = arith.constant dense<0.000000e+00> : vector<16x32xf32>
    %3 = tpu.matmul %1, %2, %cst {dimension_numbers = #tpu.dot_dimension_numbers<[1], [0], [0], [1], [0, 0, 1, 1], [], []>} : vector<16x32xf32>, vector<32x32xf32>, vector<16x32xf32> -> vector<16x32xf32>
    %c0_4 = arith.constant 0 : index
    %c0_5 = arith.constant 0 : index
    %4 = vector.load %arg8[%c0_4, %c0_5] : memref<1x32xf32, #tpu.memory_space<vmem>>, vector<1x32xf32>
    %5 = vector.broadcast %4 : vector<1x32xf32> to vector<16x32xf32>
    %6 = arith.addf %3, %5 : vector<16x32xf32>
    %c0_6 = arith.constant 0 : index
    %c0_7 = arith.constant 0 : index
    %7 = vector.load %arg5[%c0_6, %c0_7] : memref<32x32xf32, #tpu.memory_space<vmem>>, vector<32x32xf32>
    %cst_8 = arith.constant dense<0.000000e+00> : vector<16x32xf32>
    %8 = tpu.matmul %1, %7, %cst_8 {dimension_numbers = #tpu.dot_dimension_numbers<[1], [0], [0], [1], [0, 0, 1, 1], [], []>} : vector<16x32xf32>, vector<32x32xf32>, vector<16x32xf32> -> vector<16x32xf32>
    %c0_9 = arith.constant 0 : index
    %c0_10 = arith.constant 0 : index
    %9 = vector.load %arg9[%c0_9, %c0_10] : memref<1x32xf32, #tpu.memory_space<vmem>>, vector<1x32xf32>
    %10 = vector.broadcast %9 : vector<1x32xf32> to vector<16x32xf32>
    %11 = arith.addf %8, %10 : vector<16x32xf32>
    %c0_11 = arith.constant 0 : index
    %c0_12 = arith.constant 0 : index
    %12 = vector.load %arg6[%c0_11, %c0_12] : memref<32x32xf32, #tpu.memory_space<vmem>>, vector<32x32xf32>
    %cst_13 = arith.constant dense<0.000000e+00> : vector<16x32xf32>
    %13 = tpu.matmul %1, %12, %cst_13 {dimension_numbers = #tpu.dot_dimension_numbers<[1], [0], [0], [1], [0, 0, 1, 1], [], []>} : vector<16x32xf32>, vector<32x32xf32>, vector<16x32xf32> -> vector<16x32xf32>
    %c0_14 = arith.constant 0 : index
    %c0_15 = arith.constant 0 : index
    %14 = vector.load %arg10[%c0_14, %c0_15] : memref<1x32xf32, #tpu.memory_space<vmem>>, vector<1x32xf32>
    %15 = vector.broadcast %14 : vector<1x32xf32> to vector<16x32xf32>
    %16 = arith.addf %13, %15 : vector<16x32xf32>
    %c0_16 = arith.constant 0 : index
    %c0_17 = arith.constant 0 : index
    %c0_18 = arith.constant 0 : index
    %17 = vector.load %arg3[%c0_16, %c0_17, %c0_18] : memref<2x8x8xf32, #tpu.memory_space<vmem>>, vector<2x8x8xf32>
    %cst_19 = arith.constant 0.000000e+00 : f32
    %18 = vector.broadcast %cst_19 : f32 to vector<2x8x8xf32>
    %19 = arith.cmpf oeq, %17, %18 : vector<2x8x8xf32>
    %c0_20 = arith.constant 0 : index
    %c0_21 = arith.constant 0 : index
    %c0_22 = arith.constant 0 : index
    %20 = vector.load %arg2[%c0_20, %c0_21, %c0_22] : memref<2x8x8xf32, #tpu.memory_space<vmem>>, vector<2x8x8xf32>
    %cst_23 = arith.constant -1.000000e+09 : f32
    %21 = vector.broadcast %cst_23 : f32 to vector<2x8x8xf32>
    %22 = arith.select %19, %21, %20 : vector<2x8x8xi1>, vector<2x8x8xf32>
    %cst_24 = arith.constant dense<0xFF800000> : vector<2x8xf32>
    %23 = vector.multi_reduction <maximumf>, %22, %cst_24 [2] : vector<2x8x8xf32> to vector<2x8xf32>
    %24 = vector.shape_cast %23 : vector<2x8xf32> to vector<2x8x1xf32>
    %25 = vector.broadcast %24 : vector<2x8x1xf32> to vector<2x8x8xf32>
    %26 = arith.subf %22, %25 : vector<2x8x8xf32>
    %27 = math.exp %26 : vector<2x8x8xf32>
    %cst_25 = arith.constant dense<0.000000e+00> : vector<2x8xf32>
    %28 = vector.multi_reduction <add>, %27, %cst_25 [2] : vector<2x8x8xf32> to vector<2x8xf32>
    %29 = vector.shape_cast %28 : vector<2x8xf32> to vector<2x8x1xf32>
    %30 = tpu.reciprocal %29 {approx = true} : vector<2x8x1xf32> -> vector<2x8x1xf32>
    %31 = vector.broadcast %30 : vector<2x8x1xf32> to vector<2x8x8xf32>
    %32 = arith.mulf %27, %31 : vector<2x8x8xf32>
    %c0_26 = arith.constant 0 : index
    %c0_27 = arith.constant 0 : index
    %33 = vector.load %arg7[%c0_26, %c0_27] : memref<32x32xf32, #tpu.memory_space<vmem>>, vector<32x32xf32>
    %34 = vector.extract_strided_slice %6 {offsets = [0, 0], sizes = [16, 8], strides = [1, 1]} : vector<16x32xf32> to vector<16x8xf32>
    %35 = vector.shape_cast %34 : vector<16x8xf32> to vector<2x8x8xf32>
    %36 = vector.extract_strided_slice %11 {offsets = [0, 0], sizes = [16, 8], strides = [1, 1]} : vector<16x32xf32> to vector<16x8xf32>
    %37 = vector.shape_cast %36 : vector<16x8xf32> to vector<2x8x8xf32>
    %38 = vector.extract_strided_slice %16 {offsets = [0, 0], sizes = [16, 8], strides = [1, 1]} : vector<16x32xf32> to vector<16x8xf32>
    %39 = vector.shape_cast %38 : vector<16x8xf32> to vector<2x8x8xf32>
    %cst_28 = arith.constant dense<0.000000e+00> : vector<2x8x8xf32>
    %40 = tpu.matmul %35, %37, %cst_28 {dimension_numbers = #tpu.dot_dimension_numbers<[2], [2], [1], [1], [0, 0, 0, 1, 1, 1], [0], [0]>} : vector<2x8x8xf32>, vector<2x8x8xf32>, vector<2x8x8xf32> -> vector<2x8x8xf32>
    %cst_29 = arith.constant 1.250000e-01 : f32
    %41 = vector.broadcast %cst_29 : f32 to vector<2x8x8xf32>
    %42 = arith.mulf %40, %41 : vector<2x8x8xf32>
    %43 = arith.addf %42, %32 : vector<2x8x8xf32>
    %cst_30 = arith.constant dense<0xFF800000> : vector<2x8xf32>
    %44 = vector.multi_reduction <maximumf>, %43, %cst_30 [2] : vector<2x8x8xf32> to vector<2x8xf32>
    %45 = vector.shape_cast %44 : vector<2x8xf32> to vector<2x8x1xf32>
    %46 = vector.broadcast %45 : vector<2x8x1xf32> to vector<2x8x8xf32>
    %47 = arith.subf %43, %46 : vector<2x8x8xf32>
    %48 = math.exp %47 : vector<2x8x8xf32>
    %cst_31 = arith.constant dense<0.000000e+00> : vector<2x8xf32>
    %49 = vector.multi_reduction <add>, %48, %cst_31 [2] : vector<2x8x8xf32> to vector<2x8xf32>
    %50 = vector.shape_cast %49 : vector<2x8xf32> to vector<2x8x1xf32>
    %51 = tpu.reciprocal %50 {approx = true} : vector<2x8x1xf32> -> vector<2x8x1xf32>
    %52 = vector.broadcast %51 : vector<2x8x1xf32> to vector<2x8x8xf32>
    %53 = arith.mulf %48, %52 : vector<2x8x8xf32>
    %cst_32 = arith.constant dense<0.000000e+00> : vector<2x8x8xf32>
    %54 = tpu.matmul %53, %39, %cst_32 {dimension_numbers = #tpu.dot_dimension_numbers<[2], [1], [1], [2], [0, 0, 0, 1, 1, 2], [0], [0]>} : vector<2x8x8xf32>, vector<2x8x8xf32>, vector<2x8x8xf32> -> vector<2x8x8xf32>
    %55 = vector.shape_cast %54 : vector<2x8x8xf32> to vector<16x8xf32>
    %56 = vector.extract_strided_slice %33 {offsets = [0, 0], sizes = [8, 32], strides = [1, 1]} : vector<32x32xf32> to vector<8x32xf32>
    %cst_33 = arith.constant dense<0.000000e+00> : vector<16x32xf32>
    %57 = tpu.matmul %55, %56, %cst_33 {dimension_numbers = #tpu.dot_dimension_numbers<[1], [0], [0], [1], [0, 0, 1, 1], [], []>} : vector<16x8xf32>, vector<8x32xf32>, vector<16x32xf32> -> vector<16x32xf32>
    %58 = vector.extract_strided_slice %6 {offsets = [0, 8], sizes = [16, 8], strides = [1, 1]} : vector<16x32xf32> to vector<16x8xf32>
    %59 = vector.shape_cast %58 : vector<16x8xf32> to vector<2x8x8xf32>
    %60 = vector.extract_strided_slice %11 {offsets = [0, 8], sizes = [16, 8], strides = [1, 1]} : vector<16x32xf32> to vector<16x8xf32>
    %61 = vector.shape_cast %60 : vector<16x8xf32> to vector<2x8x8xf32>
    %62 = vector.extract_strided_slice %16 {offsets = [0, 8], sizes = [16, 8], strides = [1, 1]} : vector<16x32xf32> to vector<16x8xf32>
    %63 = vector.shape_cast %62 : vector<16x8xf32> to vector<2x8x8xf32>
    %cst_34 = arith.constant dense<0.000000e+00> : vector<2x8x8xf32>
    %64 = tpu.matmul %59, %61, %cst_34 {dimension_numbers = #tpu.dot_dimension_numbers<[2], [2], [1], [1], [0, 0, 0, 1, 1, 1], [0], [0]>} : vector<2x8x8xf32>, vector<2x8x8xf32>, vector<2x8x8xf32> -> vector<2x8x8xf32>
    %cst_35 = arith.constant 1.250000e-01 : f32
    %65 = vector.broadcast %cst_35 : f32 to vector<2x8x8xf32>
    %66 = arith.mulf %64, %65 : vector<2x8x8xf32>
    %67 = arith.addf %66, %32 : vector<2x8x8xf32>
    %cst_36 = arith.constant dense<0xFF800000> : vector<2x8xf32>
    %68 = vector.multi_reduction <maximumf>, %67, %cst_36 [2] : vector<2x8x8xf32> to vector<2x8xf32>
    %69 = vector.shape_cast %68 : vector<2x8xf32> to vector<2x8x1xf32>
    %70 = vector.broadcast %69 : vector<2x8x1xf32> to vector<2x8x8xf32>
    %71 = arith.subf %67, %70 : vector<2x8x8xf32>
    %72 = math.exp %71 : vector<2x8x8xf32>
    %cst_37 = arith.constant dense<0.000000e+00> : vector<2x8xf32>
    %73 = vector.multi_reduction <add>, %72, %cst_37 [2] : vector<2x8x8xf32> to vector<2x8xf32>
    %74 = vector.shape_cast %73 : vector<2x8xf32> to vector<2x8x1xf32>
    %75 = tpu.reciprocal %74 {approx = true} : vector<2x8x1xf32> -> vector<2x8x1xf32>
    %76 = vector.broadcast %75 : vector<2x8x1xf32> to vector<2x8x8xf32>
    %77 = arith.mulf %72, %76 : vector<2x8x8xf32>
    %cst_38 = arith.constant dense<0.000000e+00> : vector<2x8x8xf32>
    %78 = tpu.matmul %77, %63, %cst_38 {dimension_numbers = #tpu.dot_dimension_numbers<[2], [1], [1], [2], [0, 0, 0, 1, 1, 2], [0], [0]>} : vector<2x8x8xf32>, vector<2x8x8xf32>, vector<2x8x8xf32> -> vector<2x8x8xf32>
    %79 = vector.shape_cast %78 : vector<2x8x8xf32> to vector<16x8xf32>
    %80 = vector.extract_strided_slice %33 {offsets = [8, 0], sizes = [8, 32], strides = [1, 1]} : vector<32x32xf32> to vector<8x32xf32>
    %cst_39 = arith.constant dense<0.000000e+00> : vector<16x32xf32>
    %81 = tpu.matmul %79, %80, %cst_39 {dimension_numbers = #tpu.dot_dimension_numbers<[1], [0], [0], [1], [0, 0, 1, 1], [], []>} : vector<16x8xf32>, vector<8x32xf32>, vector<16x32xf32> -> vector<16x32xf32>
    %82 = arith.addf %57, %81 : vector<16x32xf32>
    %83 = vector.extract_strided_slice %6 {offsets = [0, 16], sizes = [16, 8], strides = [1, 1]} : vector<16x32xf32> to vector<16x8xf32>
    %84 = vector.shape_cast %83 : vector<16x8xf32> to vector<2x8x8xf32>
    %85 = vector.extract_strided_slice %11 {offsets = [0, 16], sizes = [16, 8], strides = [1, 1]} : vector<16x32xf32> to vector<16x8xf32>
    %86 = vector.shape_cast %85 : vector<16x8xf32> to vector<2x8x8xf32>
    %87 = vector.extract_strided_slice %16 {offsets = [0, 16], sizes = [16, 8], strides = [1, 1]} : vector<16x32xf32> to vector<16x8xf32>
    %88 = vector.shape_cast %87 : vector<16x8xf32> to vector<2x8x8xf32>
    %cst_40 = arith.constant dense<0.000000e+00> : vector<2x8x8xf32>
    %89 = tpu.matmul %84, %86, %cst_40 {dimension_numbers = #tpu.dot_dimension_numbers<[2], [2], [1], [1], [0, 0, 0, 1, 1, 1], [0], [0]>} : vector<2x8x8xf32>, vector<2x8x8xf32>, vector<2x8x8xf32> -> vector<2x8x8xf32>
    %cst_41 = arith.constant 1.250000e-01 : f32
    %90 = vector.broadcast %cst_41 : f32 to vector<2x8x8xf32>
    %91 = arith.mulf %89, %90 : vector<2x8x8xf32>
    %92 = arith.addf %91, %32 : vector<2x8x8xf32>
    %cst_42 = arith.constant dense<0xFF800000> : vector<2x8xf32>
    %93 = vector.multi_reduction <maximumf>, %92, %cst_42 [2] : vector<2x8x8xf32> to vector<2x8xf32>
    %94 = vector.shape_cast %93 : vector<2x8xf32> to vector<2x8x1xf32>
    %95 = vector.broadcast %94 : vector<2x8x1xf32> to vector<2x8x8xf32>
    %96 = arith.subf %92, %95 : vector<2x8x8xf32>
    %97 = math.exp %96 : vector<2x8x8xf32>
    %cst_43 = arith.constant dense<0.000000e+00> : vector<2x8xf32>
    %98 = vector.multi_reduction <add>, %97, %cst_43 [2] : vector<2x8x8xf32> to vector<2x8xf32>
    %99 = vector.shape_cast %98 : vector<2x8xf32> to vector<2x8x1xf32>
    %100 = tpu.reciprocal %99 {approx = true} : vector<2x8x1xf32> -> vector<2x8x1xf32>
    %101 = vector.broadcast %100 : vector<2x8x1xf32> to vector<2x8x8xf32>
    %102 = arith.mulf %97, %101 : vector<2x8x8xf32>
    %cst_44 = arith.constant dense<0.000000e+00> : vector<2x8x8xf32>
    %103 = tpu.matmul %102, %88, %cst_44 {dimension_numbers = #tpu.dot_dimension_numbers<[2], [1], [1], [2], [0, 0, 0, 1, 1, 2], [0], [0]>} : vector<2x8x8xf32>, vector<2x8x8xf32>, vector<2x8x8xf32> -> vector<2x8x8xf32>
    %104 = vector.shape_cast %103 : vector<2x8x8xf32> to vector<16x8xf32>
    %105 = vector.extract_strided_slice %33 {offsets = [16, 0], sizes = [8, 32], strides = [1, 1]} : vector<32x32xf32> to vector<8x32xf32>
    %cst_45 = arith.constant dense<0.000000e+00> : vector<16x32xf32>
    %106 = tpu.matmul %104, %105, %cst_45 {dimension_numbers = #tpu.dot_dimension_numbers<[1], [0], [0], [1], [0, 0, 1, 1], [], []>} : vector<16x8xf32>, vector<8x32xf32>, vector<16x32xf32> -> vector<16x32xf32>
    %107 = arith.addf %82, %106 : vector<16x32xf32>
    %108 = vector.extract_strided_slice %6 {offsets = [0, 24], sizes = [16, 8], strides = [1, 1]} : vector<16x32xf32> to vector<16x8xf32>
    %109 = vector.shape_cast %108 : vector<16x8xf32> to vector<2x8x8xf32>
    %110 = vector.extract_strided_slice %11 {offsets = [0, 24], sizes = [16, 8], strides = [1, 1]} : vector<16x32xf32> to vector<16x8xf32>
    %111 = vector.shape_cast %110 : vector<16x8xf32> to vector<2x8x8xf32>
    %112 = vector.extract_strided_slice %16 {offsets = [0, 24], sizes = [16, 8], strides = [1, 1]} : vector<16x32xf32> to vector<16x8xf32>
    %113 = vector.shape_cast %112 : vector<16x8xf32> to vector<2x8x8xf32>
    %cst_46 = arith.constant dense<0.000000e+00> : vector<2x8x8xf32>
    %114 = tpu.matmul %109, %111, %cst_46 {dimension_numbers = #tpu.dot_dimension_numbers<[2], [2], [1], [1], [0, 0, 0, 1, 1, 1], [0], [0]>} : vector<2x8x8xf32>, vector<2x8x8xf32>, vector<2x8x8xf32> -> vector<2x8x8xf32>
    %cst_47 = arith.constant 1.250000e-01 : f32
    %115 = vector.broadcast %cst_47 : f32 to vector<2x8x8xf32>
    %116 = arith.mulf %114, %115 : vector<2x8x8xf32>
    %117 = arith.addf %116, %32 : vector<2x8x8xf32>
    %cst_48 = arith.constant dense<0xFF800000> : vector<2x8xf32>
    %118 = vector.multi_reduction <maximumf>, %117, %cst_48 [2] : vector<2x8x8xf32> to vector<2x8xf32>
    %119 = vector.shape_cast %118 : vector<2x8xf32> to vector<2x8x1xf32>
    %120 = vector.broadcast %119 : vector<2x8x1xf32> to vector<2x8x8xf32>
    %121 = arith.subf %117, %120 : vector<2x8x8xf32>
    %122 = math.exp %121 : vector<2x8x8xf32>
    %cst_49 = arith.constant dense<0.000000e+00> : vector<2x8xf32>
    %123 = vector.multi_reduction <add>, %122, %cst_49 [2] : vector<2x8x8xf32> to vector<2x8xf32>
    %124 = vector.shape_cast %123 : vector<2x8xf32> to vector<2x8x1xf32>
    %125 = tpu.reciprocal %124 {approx = true} : vector<2x8x1xf32> -> vector<2x8x1xf32>
    %126 = vector.broadcast %125 : vector<2x8x1xf32> to vector<2x8x8xf32>
    %127 = arith.mulf %122, %126 : vector<2x8x8xf32>
    %cst_50 = arith.constant dense<0.000000e+00> : vector<2x8x8xf32>
    %128 = tpu.matmul %127, %113, %cst_50 {dimension_numbers = #tpu.dot_dimension_numbers<[2], [1], [1], [2], [0, 0, 0, 1, 1, 2], [0], [0]>} : vector<2x8x8xf32>, vector<2x8x8xf32>, vector<2x8x8xf32> -> vector<2x8x8xf32>
    %129 = vector.shape_cast %128 : vector<2x8x8xf32> to vector<16x8xf32>
    %130 = vector.extract_strided_slice %33 {offsets = [24, 0], sizes = [8, 32], strides = [1, 1]} : vector<32x32xf32> to vector<8x32xf32>
    %cst_51 = arith.constant dense<0.000000e+00> : vector<16x32xf32>
    %131 = tpu.matmul %129, %130, %cst_51 {dimension_numbers = #tpu.dot_dimension_numbers<[1], [0], [0], [1], [0, 0, 1, 1], [], []>} : vector<16x8xf32>, vector<8x32xf32>, vector<16x32xf32> -> vector<16x32xf32>
    %132 = arith.addf %107, %131 : vector<16x32xf32>
    %c0_52 = arith.constant 0 : index
    %c0_53 = arith.constant 0 : index
    %133 = vector.load %arg11[%c0_52, %c0_53] : memref<1x32xf32, #tpu.memory_space<vmem>>, vector<1x32xf32>
    %134 = vector.broadcast %133 : vector<1x32xf32> to vector<16x32xf32>
    %135 = arith.addf %132, %134 : vector<16x32xf32>
    %136 = vector.shape_cast %135 : vector<16x32xf32> to vector<2x8x32xf32>
    %c0_54 = arith.constant 0 : index
    %c0_55 = arith.constant 0 : index
    %c0_56 = arith.constant 0 : index
    %137 = vector.load %arg12[%c0_54, %c0_55, %c0_56] : memref<2x8x32xf32, #tpu.memory_space<vmem>>, vector<2x8x32xf32>
    tpu.vector_store %arg12[%c0_54, %c0_55, %c0_56], %136 {strides = array<i32>} : memref<2x8x32xf32, #tpu.memory_space<vmem>>, vector<2x8x32xf32>,
    return
  }
  func.func @transform_0(%arg0: i32) -> (i32, i32, i32) {
    %c0_i32 = arith.constant 0 : i32
    %c0_i32_0 = arith.constant 0 : i32
    %c0_i32_1 = arith.constant 0 : i32
    return %arg0, %c0_i32, %c0_i32_0 : i32, i32, i32
  }
  func.func @transform_1(%arg0: i32) -> (i32, i32, i32) {
    %c0_i32 = arith.constant 0 : i32
    %c0_i32_0 = arith.constant 0 : i32
    %c0_i32_1 = arith.constant 0 : i32
    return %arg0, %c0_i32, %c0_i32_0 : i32, i32, i32
  }
  func.func @transform_2(%arg0: i32) -> (i32, i32, i32) {
    %c0_i32 = arith.constant 0 : i32
    %c0_i32_0 = arith.constant 0 : i32
    %c0_i32_1 = arith.constant 0 : i32
    return %arg0, %c0_i32, %c0_i32_0 : i32, i32, i32
  }
  func.func @transform_3(%arg0: i32) -> (i32, i32) {
    %c0_i32 = arith.constant 0 : i32
    %c0_i32_0 = arith.constant 0 : i32
    %c0_i32_1 = arith.constant 0 : i32
    return %c0_i32, %c0_i32_0 : i32, i32
  }
  func.func @transform_4(%arg0: i32) -> (i32, i32) {
    %c0_i32 = arith.constant 0 : i32
    %c0_i32_0 = arith.constant 0 : i32
    %c0_i32_1 = arith.constant 0 : i32
    return %c0_i32, %c0_i32_0 : i32, i32
  }
  func.func @transform_5(%arg0: i32) -> (i32, i32) {
    %c0_i32 = arith.constant 0 : i32
    %c0_i32_0 = arith.constant 0 : i32
    %c0_i32_1 = arith.constant 0 : i32
    return %c0_i32, %c0_i32_0 : i32, i32
  }
  func.func @transform_6(%arg0: i32) -> (i32, i32) {
    %c0_i32 = arith.constant 0 : i32
    %c0_i32_0 = arith.constant 0 : i32
    %c0_i32_1 = arith.constant 0 : i32
    return %c0_i32, %c0_i32_0 : i32, i32
  }
  func.func @transform_7(%arg0: i32) -> (i32, i32) {
    %c0_i32 = arith.constant 0 : i32
    %c0_i32_0 = arith.constant 0 : i32
    %c0_i32_1 = arith.constant 0 : i32
    return %c0_i32, %c0_i32_0 : i32, i32
  }
  func.func @transform_8(%arg0: i32) -> (i32, i32) {
    %c0_i32 = arith.constant 0 : i32
    %c0_i32_0 = arith.constant 0 : i32
    %c0_i32_1 = arith.constant 0 : i32
    return %c0_i32, %c0_i32_0 : i32, i32
  }
  func.func @transform_9(%arg0: i32) -> (i32, i32) {
    %c0_i32 = arith.constant 0 : i32
    %c0_i32_0 = arith.constant 0 : i32
    %c0_i32_1 = arith.constant 0 : i32
    return %c0_i32, %c0_i32_0 : i32, i32
  }
  func.func @transform_10(%arg0: i32) -> (i32, i32) {
    %c0_i32 = arith.constant 0 : i32
    %c0_i32_0 = arith.constant 0 : i32
    %c0_i32_1 = arith.constant 0 : i32
    return %c0_i32, %c0_i32_0 : i32, i32
  }
  func.func @transform_11(%arg0: i32) -> (i32, i32, i32) {
    %c0_i32 = arith.constant 0 : i32
    %c0_i32_0 = arith.constant 0 : i32
    %c0_i32_1 = arith.constant 0 : i32
    return %arg0, %c0_i32, %c0_i32_0 : i32, i32, i32
  }
}

</mosaic_0001>

<llo_original>
// kernel: tpu_custom_call.1
$region0: #{tpu_custom_call.1}
  #allocation0 [shape = 'u32[]', space=smem, size = 0x4, offset = 0x4, fixed_abs, tag = 'smem constant byte address 0x4 - core index']
  #allocation1 [shape = 'u32[144,128]{1,0:T(1,128)}', space=vmem, size = 0x12000, scoped, tag = 'internal scratch']
  %s0 = inlined_call_operand.hbm [shape: f32[2,8,32], index: 0, kind: input, shape index: {}]
  %s1 = inlined_call_operand.hbm [shape: f32[2,8,8], index: 1, kind: input, shape index: {}]
  %s2 = inlined_call_operand.hbm [shape: f32[2,8,8], index: 2, kind: input, shape index: {}]
  %s3 = inlined_call_operand.hbm [shape: f32[32,32], index: 3, kind: input, shape index: {}]
  %s4 = inlined_call_operand.hbm [shape: f32[32,32], index: 4, kind: input, shape index: {}]
  %s5 = inlined_call_operand.hbm [shape: f32[32,32], index: 5, kind: input, shape index: {}]
  %s6 = inlined_call_operand.hbm [shape: f32[32,32], index: 6, kind: input, shape index: {}]
  %s7 = inlined_call_operand.vmem [shape: f32[1,32], index: 7, kind: input, shape index: {}]
  %s8 = inlined_call_operand.vmem [shape: f32[1,32], index: 8, kind: input, shape index: {}]
  %s9 = inlined_call_operand.vmem [shape: f32[1,32], index: 9, kind: input, shape index: {}]
  %s10 = inlined_call_operand.vmem [shape: f32[1,32], index: 10, kind: input, shape index: {}]
  %s11 = inlined_call_operand.hbm [shape: f32[2,8,32], index: 11, kind: output, shape index: {}]
  %s12 = sld [smem:[#allocation0]]
  $region82: #{tpu_custom_call.1} parent=0
    _
  %s14 = ssub.s32 1, %s12
  %s15 = scalar_select 0, %s14, %s12
  $region1: #{tpu_custom_call.1} parent=0
    #allocation2 [shape = 'u8[8192]{0}', space=vmem, size = 0x2000, scoped, tag = 'input window, operand 0, single buffered']
    #allocation3 [shape = 's32[1]{0}', space=sflag, size = 0x4, scoped, tag = 'scoped memory for tpu_custom_call.1']
    #allocation4 [shape = 's32[1]{0}', space=sflag, size = 0x4, scoped, tag = 'scoped memory for tpu_custom_call.1']
    #allocation5 [shape = 'u8[8192]{0}', space=vmem, size = 0x2000, scoped, tag = 'input window, operand 1, single buffered']
    #allocation6 [shape = 's32[1]{0}', space=sflag, size = 0x4, scoped, tag = 'scoped memory for tpu_custom_call.1']
    #allocation7 [shape = 'u8[8192]{0}', space=vmem, size = 0x2000, scoped, tag = 'input window, operand 2, single buffered']
    #allocation8 [shape = 'u8[16384]{0}', space=vmem, size = 0x4000, scoped, tag = 'input window, operand 3, single buffered']
    #allocation9 [shape = 's32[1]{0}', space=sflag, size = 0x4, scoped, tag = 'scoped memory for tpu_custom_call.1']
    #allocation10 [shape = 'u8[16384]{0}', space=vmem, size = 0x4000, scoped, tag = 'input window, operand 4, single buffered']
    #allocation11 [shape = 'u8[16384]{0}', space=vmem, size = 0x4000, scoped, tag = 'input window, operand 5, single buffered']
    #allocation12 [shape = 's32[1]{0}', space=sflag, size = 0x4, scoped, tag = 'scoped memory for tpu_custom_call.1']
    #allocation13 [shape = 'u8[16384]{0}', space=vmem, size = 0x4000, scoped, tag = 'input window, operand 6, single buffered']
    #allocation14 [shape = 'u8[8192]{0}', space=vmem, size = 0x2000, scoped, tag = 'output window, operand 0, single buffered']
    %16 = vsyncpa [#allocation3], 0
    %17 = vsyncpa [#allocation6], 0
    %18 = vsyncpa [#allocation9], 0
    %19 = vsyncpa [#allocation12], 0
    %20 = vsyncpa [#allocation4], 0
    // Predicated region
    $region2: #{tpu_custom_call.1} parent=1 // pred_check
      _
    $region3: #{tpu_custom_call.1} parent=1 // pred_check_branch
      %22 = sbr.rel (0) target = $region5
    $region4: #{tpu_custom_call.1} parent=1 // pred_region
      %s24 = ssub.s32 256, 256
      %25 = vsyncadd [#allocation3], %s24
      %s26 = sshll.u32 [#allocation2], 4
      %s27 = int_to_ptr.vmem [resolvable:$true] %s26
      %32 = dma.hbm_to_vmem [thread:$0]  %s0, 256, %s27, [#allocation3], 128, 128, 8
    $region5: #{tpu_custom_call.1} parent=1 // pred_fallthru
      _
    // Predicated region
    $region6: #{tpu_custom_call.1} parent=1 // pred_check
      _
    $region7: #{tpu_custom_call.1} parent=1 // pred_check_branch
      %34 = sbr.rel (0) target = $region9
    $region8: #{tpu_custom_call.1} parent=1 // pred_region
      %s36 = ssub.s32 256, 256
      %37 = vsyncadd [#allocation6], %s36
      %s38 = sshll.u32 [#allocation5], 4
      %s39 = int_to_ptr.vmem [resolvable:$true] %s38
      %44 = dma.hbm_to_vmem [thread:$0]  %s1, 256, %s39, [#allocation6], 128, 128, 8
    $region9: #{tpu_custom_call.1} parent=1 // pred_fallthru
      _
    // Predicated region
    $region10: #{tpu_custom_call.1} parent=1 // pred_check
      _
    $region11: #{tpu_custom_call.1} parent=1 // pred_check_branch
      %46 = sbr.rel (0) target = $region13
    $region12: #{tpu_custom_call.1} parent=1 // pred_region
      %s48 = ssub.s32 256, 256
      %49 = vsyncadd [#allocation6], %s48
      %s50 = sshll.u32 [#allocation7], 4
      %s51 = int_to_ptr.vmem [resolvable:$true] %s50
      %56 = dma.hbm_to_vmem [thread:$0]  %s2, 256, %s51, [#allocation6], 128, 128, 8
    $region13: #{tpu_custom_call.1} parent=1 // pred_fallthru
      _
    // Predicated region
    $region14: #{tpu_custom_call.1} parent=1 // pred_check
      _
    $region15: #{tpu_custom_call.1} parent=1 // pred_check_branch
      %58 = sbr.rel (0) target = $region17
    $region16: #{tpu_custom_call.1} parent=1 // pred_region
      %s60 = ssub.s32 512, 512
      %61 = vsyncadd [#allocation9], %s60
      %s62 = sshll.u32 [#allocation8], 4
      %s63 = int_to_ptr.vmem [resolvable:$true] %s62
      %68 = dma.hbm_to_vmem [thread:$0]  %s3, 512, %s63, [#allocation9], 128, 128, 8
    $region17: #{tpu_custom_call.1} parent=1 // pred_fallthru
      _
    // Predicated region
    $region18: #{tpu_custom_call.1} parent=1 // pred_check
      _
    $region19: #{tpu_custom_call.1} parent=1 // pred_check_branch
      %70 = sbr.rel (0) target = $region21
    $region20: #{tpu_custom_call.1} parent=1 // pred_region
      %s72 = ssub.s32 512, 512
      %73 = vsyncadd [#allocation9], %s72
      %s74 = sshll.u32 [#allocation10], 4
      %s75 = int_to_ptr.vmem [resolvable:$true] %s74
      %80 = dma.hbm_to_vmem [thread:$0]  %s4, 512, %s75, [#allocation9], 128, 128, 8
    $region21: #{tpu_custom_call.1} parent=1 // pred_fallthru
      _
    // Predicated region
    $region22: #{tpu_custom_call.1} parent=1 // pred_check
      _
    $region23: #{tpu_custom_call.1} parent=1 // pred_check_branch
      %82 = sbr.rel (0) target = $region25
    $region24: #{tpu_custom_call.1} parent=1 // pred_region
      %s84 = ssub.s32 512, 512
      %85 = vsyncadd [#allocation12], %s84
      %s86 = sshll.u32 [#allocation11], 4
      %s87 = int_to_ptr.vmem [resolvable:$true] %s86
      %92 = dma.hbm_to_vmem [thread:$0]  %s5, 512, %s87, [#allocation12], 128, 128, 8
    $region25: #{tpu_custom_call.1} parent=1 // pred_fallthru
      _
    // Predicated region
    $region26: #{tpu_custom_call.1} parent=1 // pred_check
      _
    $region27: #{tpu_custom_call.1} parent=1 // pred_check_branch
      %94 = sbr.rel (0) target = $region29
    $region28: #{tpu_custom_call.1} parent=1 // pred_region
      %s96 = ssub.s32 512, 512
      %97 = vsyncadd [#allocation12], %s96
      %s98 = sshll.u32 [#allocation13], 4
      %s99 = int_to_ptr.vmem [resolvable:$true] %s98
      %104 = dma.hbm_to_vmem [thread:$0]  %s6, 512, %s99, [#allocation12], 128, 128, 8
    $region29: #{tpu_custom_call.1} parent=1 // pred_fallthru
      _
    // Predicated region
    $region30: #{tpu_custom_call.1} parent=1 // pred_check
      _
    $region31: #{tpu_custom_call.1} parent=1 // pred_check_branch
      %106 = sbr.rel (0) target = $region33
    $region32: #{tpu_custom_call.1} parent=1 // pred_region
      _
    $region33: #{tpu_custom_call.1} parent=1 // pred_fallthru
      _
    // Predicated region
    $region34: #{tpu_custom_call.1} parent=1 // pred_check
      _
    $region35: #{tpu_custom_call.1} parent=1 // pred_check_branch
      %108 = sbr.rel (0) target = $region37
    $region36: #{tpu_custom_call.1} parent=1 // pred_region
      _
    $region37: #{tpu_custom_call.1} parent=1 // pred_fallthru
      _
    // Predicated region
    $region38: #{tpu_custom_call.1} parent=1 // pred_check
      _
    $region39: #{tpu_custom_call.1} parent=1 // pred_check_branch
      %110 = sbr.rel (0) target = $region41
    $region40: #{tpu_custom_call.1} parent=1 // pred_region
      _
    $region41: #{tpu_custom_call.1} parent=1 // pred_fallthru
      _
    // Predicated region
    $region42: #{tpu_custom_call.1} parent=1 // pred_check
      _
    $region43: #{tpu_custom_call.1} parent=1 // pred_check_branch
      %112 = sbr.rel (0) target = $region45
    $region44: #{tpu_custom_call.1} parent=1 // pred_region
      _
    $region45: #{tpu_custom_call.1} parent=1 // pred_fallthru
      _
    // Predicated region
    $region46: #{tpu_custom_call.1} parent=1 // pred_check
      _
    $region47: #{tpu_custom_call.1} parent=1 // pred_check_branch
      %114 = sbr.rel (0) target = $region49
    $region48: #{tpu_custom_call.1} parent=1 // pred_region
      %115 = dma.done [#allocation3], 256
    $region49: #{tpu_custom_call.1} parent=1 // pred_fallthru
      _
    // Predicated region
    $region50: #{tpu_custom_call.1} parent=1 // pred_check
      _
    $region51: #{tpu_custom_call.1} parent=1 // pred_check_branch
      %117 = sbr.rel (0) target = $region53
    $region52: #{tpu_custom_call.1} parent=1 // pred_region
      %118 = dma.done [#allocation6], 256
    $region53: #{tpu_custom_call.1} parent=1 // pred_fallthru
      _
    // Predicated region
    $region54: #{tpu_custom_call.1} parent=1 // pred_check
      _
    $region55: #{tpu_custom_call.1} parent=1 // pred_check_branch
      %120 = sbr.rel (0) target = $region57
    $region56: #{tpu_custom_call.1} parent=1 // pred_region
      %121 = dma.done [#allocation6], 256
    $region57: #{tpu_custom_call.1} parent=1 // pred_fallthru
      _
    // Predicated region
    $region58: #{tpu_custom_call.1} parent=1 // pred_check
      _
    $region59: #{tpu_custom_call.1} parent=1 // pred_check_branch
      %123 = sbr.rel (0) target = $region61
    $region60: #{tpu_custom_call.1} parent=1 // pred_region
      %124 = dma.done [#allocation9], 512
    $region61: #{tpu_custom_call.1} parent=1 // pred_fallthru
      _
    // Predicated region
    $region62: #{tpu_custom_call.1} parent=1 // pred_check
      _
    $region63: #{tpu_custom_call.1} parent=1 // pred_check_branch
      %126 = sbr.rel (0) target = $region65
    $region64: #{tpu_custom_call.1} parent=1 // pred_region
      %127 = dma.done [#allocation9], 512
    $region65: #{tpu_custom_call.1} parent=1 // pred_fallthru
      _
    // Predicated region
    $region66: #{tpu_custom_call.1} parent=1 // pred_check
      _
    $region67: #{tpu_custom_call.1} parent=1 // pred_check_branch
      %129 = sbr.rel (0) target = $region69
    $region68: #{tpu_custom_call.1} parent=1 // pred_region
      %130 = dma.done [#allocation12], 512
    $region69: #{tpu_custom_call.1} parent=1 // pred_fallthru
      _
    // Predicated region
    $region70: #{tpu_custom_call.1} parent=1 // pred_check
      _
    $region71: #{tpu_custom_call.1} parent=1 // pred_check_branch
      %132 = sbr.rel (0) target = $region73
    $region72: #{tpu_custom_call.1} parent=1 // pred_region
      %133 = dma.done [#allocation12], 512
    $region73: #{tpu_custom_call.1} parent=1 // pred_fallthru
      _
    %v134 = vld [vmem:[#allocation2] sm:$0xff]
    %v135 = vld [vmem:[#allocation2 + $0x8] sm:$0xff]
    %v136 = vld [vmem:[#allocation8] sm:$0xff]
    %v137 = vld [vmem:[#allocation8 + $0x8] sm:$0xff]
    %v138 = vld [vmem:[#allocation8 + $0x10] sm:$0xff]
    %v139 = vld [vmem:[#allocation8 + $0x18] sm:$0xff]
    %v140 = vld [vmem:[%s7] sm:$0x1]
    %v142 = vlaneseq
    %v143 = vshrl.u32 %v142, 7
    %v144 = vsub.s32 0, %v143
    %v145 = vrot.slane %v140, %v144
    %vm147 = vcmask 261120
    %v149 = vsel %vm147, %v134, 0
    %v152 = vsel %vm147, %v135, 0
    %154 = vmatprep.subr.mxu0 0.0
    %155 = vmatpush1.msra.mxu0 0.0
    %156 = vmatprep.subr.mxu0 0.0
    %157 = vmatpush1.msra.mxu0 0.0
    %158 = vmatprep.subr.mxu0 0.0
    %159 = vmatpush1.msra.mxu0 0.0
    %160 = vmatprep.subr.mxu0 0.0
    %161 = vmatpush1.msra.mxu0 0.0
    %162 = vmatprep.subr.mxu0 0.0
    %163 = vmatpush1.msra.mxu0 0.0
    %164 = vmatprep.subr.mxu0 0.0
    %165 = vmatpush1.msra.mxu0 0.0
    %166 = vmatprep.subr.mxu0 0.0
    %167 = vmatpush1.msra.mxu0 0.0
    %168 = vmatprep.subr.mxu0 0.0
    %169 = vmatpush1.msra.mxu0 0.0
    %170 = vmatprep.subr.mxu0 0.0
    %171 = vmatpush1.msra.mxu0 0.0
    %172 = vmatprep.subr.mxu0 0.0
    %173 = vmatpush1.msra.mxu0 0.0
    %174 = vmatprep.subr.mxu0 0.0
    %175 = vmatpush1.msra.mxu0 0.0
    %176 = vmatprep.subr.mxu0 0.0
    %177 = vmatpush1.msra.mxu0 0.0
    %178 = vmatprep.subr.mxu0 0.0
    %179 = vmatpush1.msra.mxu0 %v139
    %180 = vmatprep.subr.mxu0 0.0
    %181 = vmatpush1.msra.mxu0 %v138
    %182 = vmatprep.subr.mxu0 0.0
    %183 = vmatpush1.msra.mxu0 %v137
    %184 = vmatprep.subr.mxu0 0.0
    %185 = vmatpush1.msra.mxu0 %v136
    %186 = vmatprep.subr.mxu0 0.0
    %187 = vmatpush2.msra.mxu0 0.0
    %188 = vmatprep.subr.mxu0 0.0
    %189 = vmatpush2.msra.mxu0 0.0
    %190 = vmatprep.subr.mxu0 0.0
    %191 = vmatpush2.msra.mxu0 0.0
    %192 = vmatprep.subr.mxu0 0.0
    %193 = vmatpush2.msra.mxu0 0.0
    %194 = vmatprep.subr.mxu0 0.0
    %195 = vmatpush2.msra.mxu0 0.0
    %196 = vmatprep.subr.mxu0 0.0
    %197 = vmatpush2.msra.mxu0 0.0
    %198 = vmatprep.subr.mxu0 0.0
    %199 = vmatpush2.msra.mxu0 0.0
    %200 = vmatprep.subr.mxu0 0.0
    %201 = vmatpush2.msra.mxu0 0.0
    %202 = vmatprep.subr.mxu0 0.0
    %203 = vmatpush2.msra.mxu0 0.0
    %204 = vmatprep.subr.mxu0 0.0
    %205 = vmatpush2.msra.mxu0 0.0
    %206 = vmatprep.subr.mxu0 0.0
    %207 = vmatpush2.msra.mxu0 0.0
    %208 = vmatprep.subr.mxu0 0.0
    %209 = vmatpush2.msra.mxu0 0.0
    %210 = vmatprep.subr.mxu0 0.0
    %211 = vmatpush2.msra.mxu0 0.0
    %212 = vmatprep.subr.mxu0 0.0
    %213 = vmatpush2.msra.mxu0 0.0
    %214 = vmatprep.subr.mxu0 0.0
    %215 = vmatpush2.msra.mxu0 0.0
    %216 = vmatprep.subr.mxu0 0.0
    %217 = vmatpush2.msra.mxu0 0.0
    %218 = vmatprep.mubr.f32.mxu0 0.0
    %219 = vmatmul.mubr.f32.gmra.mxu0 %v149
    %v220 = vpop.f32.mrf.mxu0
    %v221 = vadd.f32 %v145, %v220
    %v222 = vpop.f32.mrf.mxu0
    %223 = vmatprep.mubr.f32.mxu0 0.0
    %224 = vmatmul.mubr.f32.gmra.mxu0 %v152
    %v225 = vpop.f32.mrf.mxu0
    %v226 = vadd.f32 %v145, %v225
    %v227 = vpop.f32.mrf.mxu0
    %228 = vdwg.mxu0
    %v229 = vld [vmem:[#allocation10] sm:$0xff]
    %v230 = vld [vmem:[#allocation10 + $0x8] sm:$0xff]
    %v231 = vld [vmem:[#allocation10 + $0x10] sm:$0xff]
    %v232 = vld [vmem:[#allocation10 + $0x18] sm:$0xff]
    %v233 = vld [vmem:[%s8] sm:$0x1]
    %v235 = vlaneseq
    %v236 = vshrl.u32 %v235, 7
    %v237 = vsub.s32 0, %v236
    %v238 = vrot.slane %v233, %v237
    %240 = vmatprep.subr.mxu0 0.0
    %241 = vmatpush1.msra.mxu0 0.0
    %242 = vmatprep.subr.mxu0 0.0
    %243 = vmatpush1.msra.mxu0 0.0
    %244 = vmatprep.subr.mxu0 0.0
    %245 = vmatpush1.msra.mxu0 0.0
    %246 = vmatprep.subr.mxu0 0.0
    %247 = vmatpush1.msra.mxu0 0.0
    %248 = vmatprep.subr.mxu0 0.0
    %249 = vmatpush1.msra.mxu0 0.0
    %250 = vmatprep.subr.mxu0 0.0
    %251 = vmatpush1.msra.mxu0 0.0
    %252 = vmatprep.subr.mxu0 0.0
    %253 = vmatpush1.msra.mxu0 0.0
    %254 = vmatprep.subr.mxu0 0.0
    %255 = vmatpush1.msra.mxu0 0.0
    %256 = vmatprep.subr.mxu0 0.0
    %257 = vmatpush1.msra.mxu0 0.0
    %258 = vmatprep.subr.mxu0 0.0
    %259 = vmatpush1.msra.mxu0 0.0
    %260 = vmatprep.subr.mxu0 0.0
    %261 = vmatpush1.msra.mxu0 0.0
    %262 = vmatprep.subr.mxu0 0.0
    %263 = vmatpush1.msra.mxu0 0.0
    %264 = vmatprep.subr.mxu0 0.0
    %265 = vmatpush1.msra.mxu0 %v232
    %266 = vmatprep.subr.mxu0 0.0
    %267 = vmatpush1.msra.mxu0 %v231
    %268 = vmatprep.subr.mxu0 0.0
    %269 = vmatpush1.msra.mxu0 %v230
    %270 = vmatprep.subr.mxu0 0.0
    %271 = vmatpush1.msra.mxu0 %v229
    %272 = vmatprep.subr.mxu0 0.0
    %273 = vmatpush2.msra.mxu0 0.0
    %274 = vmatprep.subr.mxu0 0.0
    %275 = vmatpush2.msra.mxu0 0.0
    %276 = vmatprep.subr.mxu0 0.0
    %277 = vmatpush2.msra.mxu0 0.0
    %278 = vmatprep.subr.mxu0 0.0
    %279 = vmatpush2.msra.mxu0 0.0
    %280 = vmatprep.subr.mxu0 0.0
    %281 = vmatpush2.msra.mxu0 0.0
    %282 = vmatprep.subr.mxu0 0.0
    %283 = vmatpush2.msra.mxu0 0.0
    %284 = vmatprep.subr.mxu0 0.0
    %285 = vmatpush2.msra.mxu0 0.0
    %286 = vmatprep.subr.mxu0 0.0
    %287 = vmatpush2.msra.mxu0 0.0
    %288 = vmatprep.subr.mxu0 0.0
    %289 = vmatpush2.msra.mxu0 0.0
    %290 = vmatprep.subr.mxu0 0.0
    %291 = vmatpush2.msra.mxu0 0.0
    %292 = vmatprep.subr.mxu0 0.0
    %293 = vmatpush2.msra.mxu0 0.0
    %294 = vmatprep.subr.mxu0 0.0
    %295 = vmatpush2.msra.mxu0 0.0
    %296 = vmatprep.subr.mxu0 0.0
    %297 = vmatpush2.msra.mxu0 0.0
    %298 = vmatprep.subr.mxu0 0.0
    %299 = vmatpush2.msra.mxu0 0.0
    %300 = vmatprep.subr.mxu0 0.0
    %301 = vmatpush2.msra.mxu0 0.0
    %302 = vmatprep.subr.mxu0 0.0
    %303 = vmatpush2.msra.mxu0 0.0
    %304 = vmatprep.mubr.f32.mxu0 0.0
    %305 = vmatmul.mubr.f32.gmra.mxu0 %v149
    %v306 = vpop.f32.mrf.mxu0
    %v307 = vadd.f32 %v238, %v306
    %v308 = vpop.f32.mrf.mxu0
    %309 = vmatprep.mubr.f32.mxu0 0.0
    %310 = vmatmul.mubr.f32.gmra.mxu0 %v152
    %v311 = vpop.f32.mrf.mxu0
    %v312 = vadd.f32 %v238, %v311
    %v313 = vpop.f32.mrf.mxu0
    %314 = vdwg.mxu0
    %v315 = vld [vmem:[#allocation11] sm:$0xff]
    %v316 = vld [vmem:[#allocation11 + $0x8] sm:$0xff]
    %v317 = vld [vmem:[#allocation11 + $0x10] sm:$0xff]
    %v318 = vld [vmem:[#allocation11 + $0x18] sm:$0xff]
    %v319 = vld [vmem:[%s9] sm:$0x1]
    %v321 = vlaneseq
    %v322 = vshrl.u32 %v321, 7
    %v323 = vsub.s32 0, %v322
    %v324 = vrot.slane %v319, %v323
    %326 = vmatprep.subr.mxu0 0.0
    %327 = vmatpush1.msra.mxu0 0.0
    %328 = vmatprep.subr.mxu0 0.0
    %329 = vmatpush1.msra.mxu0 0.0
    %330 = vmatprep.subr.mxu0 0.0
    %331 = vmatpush1.msra.mxu0 0.0
    %332 = vmatprep.subr.mxu0 0.0
    %333 = vmatpush1.msra.mxu0 0.0
    %334 = vmatprep.subr.mxu0 0.0
    %335 = vmatpush1.msra.mxu0 0.0
    %336 = vmatprep.subr.mxu0 0.0
    %337 = vmatpush1.msra.mxu0 0.0
    %338 = vmatprep.subr.mxu0 0.0
    %339 = vmatpush1.msra.mxu0 0.0
    %340 = vmatprep.subr.mxu0 0.0
    %341 = vmatpush1.msra.mxu0 0.0
    %342 = vmatprep.subr.mxu0 0.0
    %343 = vmatpush1.msra.mxu0 0.0
    %344 = vmatprep.subr.mxu0 0.0
    %345 = vmatpush1.msra.mxu0 0.0
    %346 = vmatprep.subr.mxu0 0.0
    %347 = vmatpush1.msra.mxu0 0.0
    %348 = vmatprep.subr.mxu0 0.0
    %349 = vmatpush1.msra.mxu0 0.0
    %350 = vmatprep.subr.mxu0 0.0
    %351 = vmatpush1.msra.mxu0 %v318
    %352 = vmatprep.subr.mxu0 0.0
    %353 = vmatpush1.msra.mxu0 %v317
    %354 = vmatprep.subr.mxu0 0.0
    %355 = vmatpush1.msra.mxu0 %v316
    %356 = vmatprep.subr.mxu0 0.0
    %357 = vmatpush1.msra.mxu0 %v315
    %358 = vmatprep.subr.mxu0 0.0
    %359 = vmatpush2.msra.mxu0 0.0
    %360 = vmatprep.subr.mxu0 0.0
    %361 = vmatpush2.msra.mxu0 0.0
    %362 = vmatprep.subr.mxu0 0.0
    %363 = vmatpush2.msra.mxu0 0.0
    %364 = vmatprep.subr.mxu0 0.0
    %365 = vmatpush2.msra.mxu0 0.0
    %366 = vmatprep.subr.mxu0 0.0
    %367 = vmatpush2.msra.mxu0 0.0
    %368 = vmatprep.subr.mxu0 0.0
    %369 = vmatpush2.msra.mxu0 0.0
    %370 = vmatprep.subr.mxu0 0.0
    %371 = vmatpush2.msra.mxu0 0.0
    %372 = vmatprep.subr.mxu0 0.0
    %373 = vmatpush2.msra.mxu0 0.0
    %374 = vmatprep.subr.mxu0 0.0
    %375 = vmatpush2.msra.mxu0 0.0
    %376 = vmatprep.subr.mxu0 0.0
    %377 = vmatpush2.msra.mxu0 0.0
    %378 = vmatprep.subr.mxu0 0.0
    %379 = vmatpush2.msra.mxu0 0.0
    %380 = vmatprep.subr.mxu0 0.0
    %381 = vmatpush2.msra.mxu0 0.0
    %382 = vmatprep.subr.mxu0 0.0
    %383 = vmatpush2.msra.mxu0 0.0
    %384 = vmatprep.subr.mxu0 0.0
    %385 = vmatpush2.msra.mxu0 0.0
    %386 = vmatprep.subr.mxu0 0.0
    %387 = vmatpush2.msra.mxu0 0.0
    %388 = vmatprep.subr.mxu0 0.0
    %389 = vmatpush2.msra.mxu0 0.0
    %390 = vmatprep.mubr.f32.mxu0 0.0
    %391 = vmatmul.mubr.f32.gmra.mxu0 %v149
    %v392 = vpop.f32.mrf.mxu0
    %v393 = vadd.f32 %v324, %v392
    %v394 = vpop.f32.mrf.mxu0
    %395 = vmatprep.mubr.f32.mxu0 0.0
    %396 = vmatmul.mubr.f32.gmra.mxu0 %v152
    %v397 = vpop.f32.mrf.mxu0
    %v398 = vadd.f32 %v324, %v397
    %v399 = vpop.f32.mrf.mxu0
    %400 = vdwg.mxu0
    %v401 = vld [vmem:[#allocation7] sm:$0xff]
    %v402 = vld [vmem:[#allocation7 + $0x8] sm:$0xff]
    %vm403 = vcmp.eq.f32.partialorder %v401, 0.0
    %vm404 = vcmp.eq.f32.partialorder %v402, 0.0
    %v405 = vld [vmem:[#allocation5] sm:$0xff]
    %v406 = vld [vmem:[#allocation5 + $0x8] sm:$0xff]
    %v407 = vsel %vm403, -1e+09, %v405
    %v408 = vsel %vm404, -1e+09, %v406
    %vm409 = vcmask 64512
    %v410 = vsel %vm409, %v407, -inf
    %411 = vmax.xlane.f32.xlu0 %v410
    %v412 = vpop.xlane.xlu0 %411
    %v413 = vsel %vm409, %v408, -inf
    %414 = vmax.xlane.f32.xlu0 %v413
    %v415 = vpop.xlane.xlu0 %414
    %v416 = vsub.f32 %v407, %v412
    %v417 = vsub.f32 %v408, %v415
    %v418 = vmul.f32 %v416, 1.442695
    %v419 = vpow.pop %v418
    %v420 = vmul.f32 %v417, 1.442695
    %v421 = vpow.pop %v420
    %v422 = vsel %vm409, %v419, 0.0
    %423 = vadd.xlane.f32.xlu0 %v422
    %v424 = vpop.xlane.xlu0 %423
    %v425 = vsel %vm409, %v421, 0.0
    %426 = vadd.xlane.f32.xlu0 %v425
    %v427 = vpop.xlane.xlu0 %426
    %v428 = vrcp.pop %v424
    %v429 = vrcp.pop %v427
    %v430 = vmul.f32 %v419, %v428
    %v431 = vmul.f32 %v421, %v429
    %v432 = vld [vmem:[#allocation13] sm:$0xff]
    %v433 = vld [vmem:[#allocation13 + $0x8] sm:$0xff]
    %v434 = vld [vmem:[#allocation13 + $0x10] sm:$0xff]
    %v435 = vld [vmem:[#allocation13 + $0x18] sm:$0xff]
    %v437 = vsel %vm409, %v221, 0
    %v440 = vsel %vm409, %v307, 0
    %442 = vmatprep.subr.mxu0 0.0
    %443 = vmatpush1.xpose.msra.mxu0 0.0
    %444 = vmatprep.subr.mxu0 0.0
    %445 = vmatpush1.xpose.msra.mxu0 0.0
    %446 = vmatprep.subr.mxu0 0.0
    %447 = vmatpush1.xpose.msra.mxu0 0.0
    %448 = vmatprep.subr.mxu0 0.0
    %449 = vmatpush1.xpose.msra.mxu0 0.0
    %450 = vmatprep.subr.mxu0 0.0
    %451 = vmatpush1.xpose.msra.mxu0 0.0
    %452 = vmatprep.subr.mxu0 0.0
    %453 = vmatpush1.xpose.msra.mxu0 0.0
    %454 = vmatprep.subr.mxu0 0.0
    %455 = vmatpush1.xpose.msra.mxu0 0.0
    %456 = vmatprep.subr.mxu0 0.0
    %457 = vmatpush1.xpose.msra.mxu0 0.0
    %458 = vmatprep.subr.mxu0 0.0
    %459 = vmatpush1.xpose.msra.mxu0 0.0
    %460 = vmatprep.subr.mxu0 0.0
    %461 = vmatpush1.xpose.msra.mxu0 0.0
    %462 = vmatprep.subr.mxu0 0.0
    %463 = vmatpush1.xpose.msra.mxu0 0.0
    %464 = vmatprep.subr.mxu0 0.0
    %465 = vmatpush1.xpose.msra.mxu0 0.0
    %466 = vmatprep.subr.mxu0 0.0
    %467 = vmatpush1.xpose.msra.mxu0 0.0
    %468 = vmatprep.subr.mxu0 0.0
    %469 = vmatpush1.xpose.msra.mxu0 0.0
    %470 = vmatprep.subr.mxu0 0.0
    %471 = vmatpush1.xpose.msra.mxu0 0.0
    %472 = vmatprep.subr.mxu0 0.0
    %473 = vmatpush1.xpose.msra.mxu0 %v440
    %474 = vmatprep.subr.mxu0 0.0
    %475 = vmatpush2.xpose.msra.mxu0 0.0
    %476 = vmatprep.subr.mxu0 0.0
    %477 = vmatpush2.xpose.msra.mxu0 0.0
    %478 = vmatprep.subr.mxu0 0.0
    %479 = vmatpush2.xpose.msra.mxu0 0.0
    %480 = vmatprep.subr.mxu0 0.0
    %481 = vmatpush2.xpose.msra.mxu0 0.0
    %482 = vmatprep.subr.mxu0 0.0
    %483 = vmatpush2.xpose.msra.mxu0 0.0
    %484 = vmatprep.subr.mxu0 0.0
    %485 = vmatpush2.xpose.msra.mxu0 0.0
    %486 = vmatprep.subr.mxu0 0.0
    %487 = vmatpush2.xpose.msra.mxu0 0.0
    %488 = vmatprep.subr.mxu0 0.0
    %489 = vmatpush2.xpose.msra.mxu0 0.0
    %490 = vmatprep.subr.mxu0 0.0
    %491 = vmatpush2.xpose.msra.mxu0 0.0
    %492 = vmatprep.subr.mxu0 0.0
    %493 = vmatpush2.xpose.msra.mxu0 0.0
    %494 = vmatprep.subr.mxu0 0.0
    %495 = vmatpush2.xpose.msra.mxu0 0.0
    %496 = vmatprep.subr.mxu0 0.0
    %497 = vmatpush2.xpose.msra.mxu0 0.0
    %498 = vmatprep.subr.mxu0 0.0
    %499 = vmatpush2.xpose.msra.mxu0 0.0
    %500 = vmatprep.subr.mxu0 0.0
    %501 = vmatpush2.xpose.msra.mxu0 0.0
    %502 = vmatprep.subr.mxu0 0.0
    %503 = vmatpush2.xpose.msra.mxu0 0.0
    %504 = vmatprep.subr.mxu0 0.0
    %505 = vmatpush2.xpose.msra.mxu0 0.0
    %506 = vmatprep.mubr.f32.mxu0 0.0
    %507 = vmatmul.mubr.f32.gmra.mxu0 %v437
    %v508 = vpop.f32.mrf.mxu0
    %v509 = vadd.f32 0.0, %v508
    %v510 = vpop.f32.mrf.mxu0
    %511 = vdwg.mxu0
    %v513 = vsel %vm409, %v226, 0
    %v516 = vsel %vm409, %v312, 0
    %518 = vmatprep.subr.mxu0 0.0
    %519 = vmatpush1.xpose.msra.mxu0 0.0
    %520 = vmatprep.subr.mxu0 0.0
    %521 = vmatpush1.xpose.msra.mxu0 0.0
    %522 = vmatprep.subr.mxu0 0.0
    %523 = vmatpush1.xpose.msra.mxu0 0.0
    %524 = vmatprep.subr.mxu0 0.0
    %525 = vmatpush1.xpose.msra.mxu0 0.0
    %526 = vmatprep.subr.mxu0 0.0
    %527 = vmatpush1.xpose.msra.mxu0 0.0
    %528 = vmatprep.subr.mxu0 0.0
    %529 = vmatpush1.xpose.msra.mxu0 0.0
    %530 = vmatprep.subr.mxu0 0.0
    %531 = vmatpush1.xpose.msra.mxu0 0.0
    %532 = vmatprep.subr.mxu0 0.0
    %533 = vmatpush1.xpose.msra.mxu0 0.0
    %534 = vmatprep.subr.mxu0 0.0
    %535 = vmatpush1.xpose.msra.mxu0 0.0
    %536 = vmatprep.subr.mxu0 0.0
    %537 = vmatpush1.xpose.msra.mxu0 0.0
    %538 = vmatprep.subr.mxu0 0.0
    %539 = vmatpush1.xpose.msra.mxu0 0.0
    %540 = vmatprep.subr.mxu0 0.0
    %541 = vmatpush1.xpose.msra.mxu0 0.0
    %542 = vmatprep.subr.mxu0 0.0
    %543 = vmatpush1.xpose.msra.mxu0 0.0
    %544 = vmatprep.subr.mxu0 0.0
    %545 = vmatpush1.xpose.msra.mxu0 0.0
    %546 = vmatprep.subr.mxu0 0.0
    %547 = vmatpush1.xpose.msra.mxu0 0.0
    %548 = vmatprep.subr.mxu0 0.0
    %549 = vmatpush1.xpose.msra.mxu0 %v516
    %550 = vmatprep.subr.mxu0 0.0
    %551 = vmatpush2.xpose.msra.mxu0 0.0
    %552 = vmatprep.subr.mxu0 0.0
    %553 = vmatpush2.xpose.msra.mxu0 0.0
    %554 = vmatprep.subr.mxu0 0.0
    %555 = vmatpush2.xpose.msra.mxu0 0.0
    %556 = vmatprep.subr.mxu0 0.0
    %557 = vmatpush2.xpose.msra.mxu0 0.0
    %558 = vmatprep.subr.mxu0 0.0
    %559 = vmatpush2.xpose.msra.mxu0 0.0
    %560 = vmatprep.subr.mxu0 0.0
    %561 = vmatpush2.xpose.msra.mxu0 0.0
    %562 = vmatprep.subr.mxu0 0.0
    %563 = vmatpush2.xpose.msra.mxu0 0.0
    %564 = vmatprep.subr.mxu0 0.0
    %565 = vmatpush2.xpose.msra.mxu0 0.0
    %566 = vmatprep.subr.mxu0 0.0
    %567 = vmatpush2.xpose.msra.mxu0 0.0
    %568 = vmatprep.subr.mxu0 0.0
    %569 = vmatpush2.xpose.msra.mxu0 0.0
    %570 = vmatprep.subr.mxu0 0.0
    %571 = vmatpush2.xpose.msra.mxu0 0.0
    %572 = vmatprep.subr.mxu0 0.0
    %573 = vmatpush2.xpose.msra.mxu0 0.0
    %574 = vmatprep.subr.mxu0 0.0
    %575 = vmatpush2.xpose.msra.mxu0 0.0
    %576 = vmatprep.subr.mxu0 0.0
    %577 = vmatpush2.xpose.msra.mxu0 0.0
    %578 = vmatprep.subr.mxu0 0.0
    %579 = vmatpush2.xpose.msra.mxu0 0.0
    %580 = vmatprep.subr.mxu0 0.0
    %581 = vmatpush2.xpose.msra.mxu0 0.0
    %582 = vmatprep.mubr.f32.mxu0 0.0
    %583 = vmatmul.mubr.f32.gmra.mxu0 %v513
    %v584 = vpop.f32.mrf.mxu0
    %v585 = vadd.f32 0.0, %v584
    %v586 = vpop.f32.mrf.mxu0
    %587 = vdwg.mxu0
    %v588 = vmul.f32 %v509, 0.125
    %v589 = vmul.f32 %v585, 0.125
    %v590 = vadd.f32 %v588, %v430
    %v591 = vadd.f32 %v589, %v431
    %v592 = vsel %vm409, %v590, -inf
    %593 = vmax.xlane.f32.xlu0 %v592
    %v594 = vpop.xlane.xlu0 %593
    %v595 = vsel %vm409, %v591, -inf
    %596 = vmax.xlane.f32.xlu0 %v595
    %v597 = vpop.xlane.xlu0 %596
    %v598 = vsub.f32 %v590, %v594
    %v599 = vsub.f32 %v591, %v597
    %v600 = vmul.f32 %v598, 1.442695
    %v601 = vpow.pop %v600
    %v602 = vmul.f32 %v599, 1.442695
    %v603 = vpow.pop %v602
    %v604 = vsel %vm409, %v601, 0.0
    %605 = vadd.xlane.f32.xlu0 %v604
    %v606 = vpop.xlane.xlu0 %605
    %v607 = vsel %vm409, %v603, 0.0
    %608 = vadd.xlane.f32.xlu0 %v607
    %v609 = vpop.xlane.xlu0 %608
    %v610 = vrcp.pop %v606
    %v611 = vrcp.pop %v609
    %v612 = vmul.f32 %v601, %v610
    %v613 = vmul.f32 %v603, %v611
    %v615 = vsel %vm409, %v612, 0
    %617 = vmatprep.subr.mxu0 0.0
    %618 = vmatpush1.msra.mxu0 0.0
    %619 = vmatprep.subr.mxu0 0.0
    %620 = vmatpush1.msra.mxu0 0.0
    %621 = vmatprep.subr.mxu0 0.0
    %622 = vmatpush1.msra.mxu0 0.0
    %623 = vmatprep.subr.mxu0 0.0
    %624 = vmatpush1.msra.mxu0 0.0
    %625 = vmatprep.subr.mxu0 0.0
    %626 = vmatpush1.msra.mxu0 0.0
    %627 = vmatprep.subr.mxu0 0.0
    %628 = vmatpush1.msra.mxu0 0.0
    %629 = vmatprep.subr.mxu0 0.0
    %630 = vmatpush1.msra.mxu0 0.0
    %631 = vmatprep.subr.mxu0 0.0
    %632 = vmatpush1.msra.mxu0 0.0
    %633 = vmatprep.subr.mxu0 0.0
    %634 = vmatpush1.msra.mxu0 0.0
    %635 = vmatprep.subr.mxu0 0.0
    %636 = vmatpush1.msra.mxu0 0.0
    %637 = vmatprep.subr.mxu0 0.0
    %638 = vmatpush1.msra.mxu0 0.0
    %639 = vmatprep.subr.mxu0 0.0
    %640 = vmatpush1.msra.mxu0 0.0
    %641 = vmatprep.subr.mxu0 0.0
    %642 = vmatpush1.msra.mxu0 0.0
    %643 = vmatprep.subr.mxu0 0.0
    %644 = vmatpush1.msra.mxu0 0.0
    %645 = vmatprep.subr.mxu0 0.0
    %646 = vmatpush1.msra.mxu0 0.0
    %647 = vmatprep.subr.mxu0 0.0
    %648 = vmatpush1.msra.mxu0 %v393
    %649 = vmatprep.subr.mxu0 0.0
    %650 = vmatpush2.msra.mxu0 0.0
    %651 = vmatprep.subr.mxu0 0.0
    %652 = vmatpush2.msra.mxu0 0.0
    %653 = vmatprep.subr.mxu0 0.0
    %654 = vmatpush2.msra.mxu0 0.0
    %655 = vmatprep.subr.mxu0 0.0
    %656 = vmatpush2.msra.mxu0 0.0
    %657 = vmatprep.subr.mxu0 0.0
    %658 = vmatpush2.msra.mxu0 0.0
    %659 = vmatprep.subr.mxu0 0.0
    %660 = vmatpush2.msra.mxu0 0.0
    %661 = vmatprep.subr.mxu0 0.0
    %662 = vmatpush2.msra.mxu0 0.0
    %663 = vmatprep.subr.mxu0 0.0
    %664 = vmatpush2.msra.mxu0 0.0
    %665 = vmatprep.subr.mxu0 0.0
    %666 = vmatpush2.msra.mxu0 0.0
    %667 = vmatprep.subr.mxu0 0.0
    %668 = vmatpush2.msra.mxu0 0.0
    %669 = vmatprep.subr.mxu0 0.0
    %670 = vmatpush2.msra.mxu0 0.0
    %671 = vmatprep.subr.mxu0 0.0
    %672 = vmatpush2.msra.mxu0 0.0
    %673 = vmatprep.subr.mxu0 0.0
    %674 = vmatpush2.msra.mxu0 0.0
    %675 = vmatprep.subr.mxu0 0.0
    %676 = vmatpush2.msra.mxu0 0.0
    %677 = vmatprep.subr.mxu0 0.0
    %678 = vmatpush2.msra.mxu0 0.0
    %679 = vmatprep.subr.mxu0 0.0
    %680 = vmatpush2.msra.mxu0 0.0
    %681 = vmatprep.mubr.f32.mxu0 0.0
    %682 = vmatmul.mubr.f32.gmra.mxu0 %v615
    %v683 = vpop.f32.mrf.mxu0
    %v684 = vadd.f32 0.0, %v683
    %v685 = vpop.f32.mrf.mxu0
    %686 = vdwg.mxu0
    %v688 = vsel %vm409, %v613, 0
    %690 = vmatprep.subr.mxu0 0.0
    %691 = vmatpush1.msra.mxu0 0.0
    %692 = vmatprep.subr.mxu0 0.0
    %693 = vmatpush1.msra.mxu0 0.0
    %694 = vmatprep.subr.mxu0 0.0
    %695 = vmatpush1.msra.mxu0 0.0
    %696 = vmatprep.subr.mxu0 0.0
    %697 = vmatpush1.msra.mxu0 0.0
    %698 = vmatprep.subr.mxu0 0.0
    %699 = vmatpush1.msra.mxu0 0.0
    %700 = vmatprep.subr.mxu0 0.0
    %701 = vmatpush1.msra.mxu0 0.0
    %702 = vmatprep.subr.mxu0 0.0
    %703 = vmatpush1.msra.mxu0 0.0
    %704 = vmatprep.subr.mxu0 0.0
    %705 = vmatpush1.msra.mxu0 0.0
    %706 = vmatprep.subr.mxu0 0.0
    %707 = vmatpush1.msra.mxu0 0.0
    %708 = vmatprep.subr.mxu0 0.0
    %709 = vmatpush1.msra.mxu0 0.0
    %710 = vmatprep.subr.mxu0 0.0
    %711 = vmatpush1.msra.mxu0 0.0
    %712 = vmatprep.subr.mxu0 0.0
    %713 = vmatpush1.msra.mxu0 0.0
    %714 = vmatprep.subr.mxu0 0.0
    %715 = vmatpush1.msra.mxu0 0.0
    %716 = vmatprep.subr.mxu0 0.0
    %717 = vmatpush1.msra.mxu0 0.0
    %718 = vmatprep.subr.mxu0 0.0
    %719 = vmatpush1.msra.mxu0 0.0
    %720 = vmatprep.subr.mxu0 0.0
    %721 = vmatpush1.msra.mxu0 %v398
    %722 = vmatprep.subr.mxu0 0.0
    %723 = vmatpush2.msra.mxu0 0.0
    %724 = vmatprep.subr.mxu0 0.0
    %725 = vmatpush2.msra.mxu0 0.0
    %726 = vmatprep.subr.mxu0 0.0
    %727 = vmatpush2.msra.mxu0 0.0
    %728 = vmatprep.subr.mxu0 0.0
    %729 = vmatpush2.msra.mxu0 0.0
    %730 = vmatprep.subr.mxu0 0.0
    %731 = vmatpush2.msra.mxu0 0.0
    %732 = vmatprep.subr.mxu0 0.0
    %733 = vmatpush2.msra.mxu0 0.0
    %734 = vmatprep.subr.mxu0 0.0
    %735 = vmatpush2.msra.mxu0 0.0
    %736 = vmatprep.subr.mxu0 0.0
    %737 = vmatpush2.msra.mxu0 0.0
    %738 = vmatprep.subr.mxu0 0.0
    %739 = vmatpush2.msra.mxu0 0.0
    %740 = vmatprep.subr.mxu0 0.0
    %741 = vmatpush2.msra.mxu0 0.0
    %742 = vmatprep.subr.mxu0 0.0
    %743 = vmatpush2.msra.mxu0 0.0
    %744 = vmatprep.subr.mxu0 0.0
    %745 = vmatpush2.msra.mxu0 0.0
    %746 = vmatprep.subr.mxu0 0.0
    %747 = vmatpush2.msra.mxu0 0.0
    %748 = vmatprep.subr.mxu0 0.0
    %749 = vmatpush2.msra.mxu0 0.0
    %750 = vmatprep.subr.mxu0 0.0
    %751 = vmatpush2.msra.mxu0 0.0
    %752 = vmatprep.subr.mxu0 0.0
    %753 = vmatpush2.msra.mxu0 0.0
    %754 = vmatprep.mubr.f32.mxu0 0.0
    %755 = vmatmul.mubr.f32.gmra.mxu0 %v688
    %v756 = vpop.f32.mrf.mxu0
    %v757 = vadd.f32 0.0, %v756
    %v758 = vpop.f32.mrf.mxu0
    %759 = vdwg.mxu0
    %760 = vrot.lane.b32.xlu0 %v221, 120
    %v761 = vpop.permute.xlu0 %760
    %762 = vrot.lane.b32.xlu0 %v307, 120
    %v763 = vpop.permute.xlu0 %762
    %v764 = vsel %vm409, %v761, 0
    %v766 = vsel %vm409, %v763, 0
    %768 = vmatprep.subr.mxu0 0.0
    %769 = vmatpush1.xpose.msra.mxu0 0.0
    %770 = vmatprep.subr.mxu0 0.0
    %771 = vmatpush1.xpose.msra.mxu0 0.0
    %772 = vmatprep.subr.mxu0 0.0
    %773 = vmatpush1.xpose.msra.mxu0 0.0
    %774 = vmatprep.subr.mxu0 0.0
    %775 = vmatpush1.xpose.msra.mxu0 0.0
    %776 = vmatprep.subr.mxu0 0.0
    %777 = vmatpush1.xpose.msra.mxu0 0.0
    %778 = vmatprep.subr.mxu0 0.0
    %779 = vmatpush1.xpose.msra.mxu0 0.0
    %780 = vmatprep.subr.mxu0 0.0
    %781 = vmatpush1.xpose.msra.mxu0 0.0
    %782 = vmatprep.subr.mxu0 0.0
    %783 = vmatpush1.xpose.msra.mxu0 0.0
    %784 = vmatprep.subr.mxu0 0.0
    %785 = vmatpush1.xpose.msra.mxu0 0.0
    %786 = vmatprep.subr.mxu0 0.0
    %787 = vmatpush1.xpose.msra.mxu0 0.0
    %788 = vmatprep.subr.mxu0 0.0
    %789 = vmatpush1.xpose.msra.mxu0 0.0
    %790 = vmatprep.subr.mxu0 0.0
    %791 = vmatpush1.xpose.msra.mxu0 0.0
    %792 = vmatprep.subr.mxu0 0.0
    %793 = vmatpush1.xpose.msra.mxu0 0.0
    %794 = vmatprep.subr.mxu0 0.0
    %795 = vmatpush1.xpose.msra.mxu0 0.0
    %796 = vmatprep.subr.mxu0 0.0
    %797 = vmatpush1.xpose.msra.mxu0 0.0
    %798 = vmatprep.subr.mxu0 0.0
    %799 = vmatpush1.xpose.msra.mxu0 %v766
    %800 = vmatprep.subr.mxu0 0.0
    %801 = vmatpush2.xpose.msra.mxu0 0.0
    %802 = vmatprep.subr.mxu0 0.0
    %803 = vmatpush2.xpose.msra.mxu0 0.0
    %804 = vmatprep.subr.mxu0 0.0
    %805 = vmatpush2.xpose.msra.mxu0 0.0
    %806 = vmatprep.subr.mxu0 0.0
    %807 = vmatpush2.xpose.msra.mxu0 0.0
    %808 = vmatprep.subr.mxu0 0.0
    %809 = vmatpush2.xpose.msra.mxu0 0.0
    %810 = vmatprep.subr.mxu0 0.0
    %811 = vmatpush2.xpose.msra.mxu0 0.0
    %812 = vmatprep.subr.mxu0 0.0
    %813 = vmatpush2.xpose.msra.mxu0 0.0
    %814 = vmatprep.subr.mxu0 0.0
    %815 = vmatpush2.xpose.msra.mxu0 0.0
    %816 = vmatprep.subr.mxu0 0.0
    %817 = vmatpush2.xpose.msra.mxu0 0.0
    %818 = vmatprep.subr.mxu0 0.0
    %819 = vmatpush2.xpose.msra.mxu0 0.0
    %820 = vmatprep.subr.mxu0 0.0
    %821 = vmatpush2.xpose.msra.mxu0 0.0
    %822 = vmatprep.subr.mxu0 0.0
    %823 = vmatpush2.xpose.msra.mxu0 0.0
    %824 = vmatprep.subr.mxu0 0.0
    %825 = vmatpush2.xpose.msra.mxu0 0.0
    %826 = vmatprep.subr.mxu0 0.0
    %827 = vmatpush2.xpose.msra.mxu0 0.0
    %828 = vmatprep.subr.mxu0 0.0
    %829 = vmatpush2.xpose.msra.mxu0 0.0
    %830 = vmatprep.subr.mxu0 0.0
    %831 = vmatpush2.xpose.msra.mxu0 0.0
    %832 = vmatprep.mubr.f32.mxu0 0.0
    %833 = vmatmul.mubr.f32.gmra.mxu0 %v764
    %v834 = vpop.f32.mrf.mxu0
    %v835 = vadd.f32 0.0, %v834
    %v836 = vpop.f32.mrf.mxu0
    %837 = vdwg.mxu0
    %838 = vrot.lane.b32.xlu0 %v226, 120
    %v839 = vpop.permute.xlu0 %838
    %840 = vrot.lane.b32.xlu0 %v312, 120
    %v841 = vpop.permute.xlu0 %840
    %v842 = vsel %vm409, %v839, 0
    %v844 = vsel %vm409, %v841, 0
    %846 = vmatprep.subr.mxu0 0.0
    %847 = vmatpush1.xpose.msra.mxu0 0.0
    %848 = vmatprep.subr.mxu0 0.0
    %849 = vmatpush1.xpose.msra.mxu0 0.0
    %850 = vmatprep.subr.mxu0 0.0
    %851 = vmatpush1.xpose.msra.mxu0 0.0
    %852 = vmatprep.subr.mxu0 0.0
    %853 = vmatpush1.xpose.msra.mxu0 0.0
    %854 = vmatprep.subr.mxu0 0.0
    %855 = vmatpush1.xpose.msra.mxu0 0.0
    %856 = vmatprep.subr.mxu0 0.0
    %857 = vmatpush1.xpose.msra.mxu0 0.0
    %858 = vmatprep.subr.mxu0 0.0
    %859 = vmatpush1.xpose.msra.mxu0 0.0
    %860 = vmatprep.subr.mxu0 0.0
    %861 = vmatpush1.xpose.msra.mxu0 0.0
    %862 = vmatprep.subr.mxu0 0.0
    %863 = vmatpush1.xpose.msra.mxu0 0.0
    %864 = vmatprep.subr.mxu0 0.0
    %865 = vmatpush1.xpose.msra.mxu0 0.0
    %866 = vmatprep.subr.mxu0 0.0
    %867 = vmatpush1.xpose.msra.mxu0 0.0
    %868 = vmatprep.subr.mxu0 0.0
    %869 = vmatpush1.xpose.msra.mxu0 0.0
    %870 = vmatprep.subr.mxu0 0.0
    %871 = vmatpush1.xpose.msra.mxu0 0.0
    %872 = vmatprep.subr.mxu0 0.0
    %873 = vmatpush1.xpose.msra.mxu0 0.0
    %874 = vmatprep.subr.mxu0 0.0
    %875 = vmatpush1.xpose.msra.mxu0 0.0
    %876 = vmatprep.subr.mxu0 0.0
    %877 = vmatpush1.xpose.msra.mxu0 %v844
    %878 = vmatprep.subr.mxu0 0.0
    %879 = vmatpush2.xpose.msra.mxu0 0.0
    %880 = vmatprep.subr.mxu0 0.0
    %881 = vmatpush2.xpose.msra.mxu0 0.0
    %882 = vmatprep.subr.mxu0 0.0
    %883 = vmatpush2.xpose.msra.mxu0 0.0
    %884 = vmatprep.subr.mxu0 0.0
    %885 = vmatpush2.xpose.msra.mxu0 0.0
    %886 = vmatprep.subr.mxu0 0.0
    %887 = vmatpush2.xpose.msra.mxu0 0.0
    %888 = vmatprep.subr.mxu0 0.0
    %889 = vmatpush2.xpose.msra.mxu0 0.0
    %890 = vmatprep.subr.mxu0 0.0
    %891 = vmatpush2.xpose.msra.mxu0 0.0
    %892 = vmatprep.subr.mxu0 0.0
    %893 = vmatpush2.xpose.msra.mxu0 0.0
    %894 = vmatprep.subr.mxu0 0.0
    %895 = vmatpush2.xpose.msra.mxu0 0.0
    %896 = vmatprep.subr.mxu0 0.0
    %897 = vmatpush2.xpose.msra.mxu0 0.0
    %898 = vmatprep.subr.mxu0 0.0
    %899 = vmatpush2.xpose.msra.mxu0 0.0
    %900 = vmatprep.subr.mxu0 0.0
    %901 = vmatpush2.xpose.msra.mxu0 0.0
    %902 = vmatprep.subr.mxu0 0.0
    %903 = vmatpush2.xpose.msra.mxu0 0.0
    %904 = vmatprep.subr.mxu0 0.0
    %905 = vmatpush2.xpose.msra.mxu0 0.0
    %906 = vmatprep.subr.mxu0 0.0
    %907 = vmatpush2.xpose.msra.mxu0 0.0
    %908 = vmatprep.subr.mxu0 0.0
    %909 = vmatpush2.xpose.msra.mxu0 0.0
    %910 = vmatprep.mubr.f32.mxu0 0.0
    %911 = vmatmul.mubr.f32.gmra.mxu0 %v842
    %v912 = vpop.f32.mrf.mxu0
    %v913 = vadd.f32 0.0, %v912
    %v914 = vpop.f32.mrf.mxu0
    %915 = vdwg.mxu0
    %v916 = vmul.f32 %v835, 0.125
    %v917 = vmul.f32 %v913, 0.125
    %v918 = vadd.f32 %v916, %v430
    %v919 = vadd.f32 %v917, %v431
    %v920 = vsel %vm409, %v918, -inf
    %921 = vmax.xlane.f32.xlu0 %v920
    %v922 = vpop.xlane.xlu0 %921
    %v923 = vsel %vm409, %v919, -inf
    %924 = vmax.xlane.f32.xlu0 %v923
    %v925 = vpop.xlane.xlu0 %924
    %v926 = vsub.f32 %v918, %v922
    %v927 = vsub.f32 %v919, %v925
    %v928 = vmul.f32 %v926, 1.442695
    %v929 = vpow.pop %v928
    %v930 = vmul.f32 %v927, 1.442695
    %v931 = vpow.pop %v930
    %v932 = vsel %vm409, %v929, 0.0
    %933 = vadd.xlane.f32.xlu0 %v932
    %v934 = vpop.xlane.xlu0 %933
    %v935 = vsel %vm409, %v931, 0.0
    %936 = vadd.xlane.f32.xlu0 %v935
    %v937 = vpop.xlane.xlu0 %936
    %v938 = vrcp.pop %v934
    %v939 = vrcp.pop %v937
    %v940 = vmul.f32 %v929, %v938
    %v941 = vmul.f32 %v931, %v939
    %943 = vrot.lane.b32.xlu0 %v393, 120
    %v944 = vpop.permute.xlu0 %943
    %v947 = vsel %vm409, %v940, 0
    %949 = vmatprep.subr.mxu0 0.0
    %950 = vmatpush1.msra.mxu0 0.0
    %951 = vmatprep.subr.mxu0 0.0
    %952 = vmatpush1.msra.mxu0 0.0
    %953 = vmatprep.subr.mxu0 0.0
    %954 = vmatpush1.msra.mxu0 0.0
    %955 = vmatprep.subr.mxu0 0.0
    %956 = vmatpush1.msra.mxu0 0.0
    %957 = vmatprep.subr.mxu0 0.0
    %958 = vmatpush1.msra.mxu0 0.0
    %959 = vmatprep.subr.mxu0 0.0
    %960 = vmatpush1.msra.mxu0 0.0
    %961 = vmatprep.subr.mxu0 0.0
    %962 = vmatpush1.msra.mxu0 0.0
    %963 = vmatprep.subr.mxu0 0.0
    %964 = vmatpush1.msra.mxu0 0.0
    %965 = vmatprep.subr.mxu0 0.0
    %966 = vmatpush1.msra.mxu0 0.0
    %967 = vmatprep.subr.mxu0 0.0
    %968 = vmatpush1.msra.mxu0 0.0
    %969 = vmatprep.subr.mxu0 0.0
    %970 = vmatpush1.msra.mxu0 0.0
    %971 = vmatprep.subr.mxu0 0.0
    %972 = vmatpush1.msra.mxu0 0.0
    %973 = vmatprep.subr.mxu0 0.0
    %974 = vmatpush1.msra.mxu0 0.0
    %975 = vmatprep.subr.mxu0 0.0
    %976 = vmatpush1.msra.mxu0 0.0
    %977 = vmatprep.subr.mxu0 0.0
    %978 = vmatpush1.msra.mxu0 0.0
    %979 = vmatprep.subr.mxu0 0.0
    %980 = vmatpush1.msra.mxu0 %v944
    %981 = vmatprep.subr.mxu0 0.0
    %982 = vmatpush2.msra.mxu0 0.0
    %983 = vmatprep.subr.mxu0 0.0
    %984 = vmatpush2.msra.mxu0 0.0
    %985 = vmatprep.subr.mxu0 0.0
    %986 = vmatpush2.msra.mxu0 0.0
    %987 = vmatprep.subr.mxu0 0.0
    %988 = vmatpush2.msra.mxu0 0.0
    %989 = vmatprep.subr.mxu0 0.0
    %990 = vmatpush2.msra.mxu0 0.0
    %991 = vmatprep.subr.mxu0 0.0
    %992 = vmatpush2.msra.mxu0 0.0
    %993 = vmatprep.subr.mxu0 0.0
    %994 = vmatpush2.msra.mxu0 0.0
    %995 = vmatprep.subr.mxu0 0.0
    %996 = vmatpush2.msra.mxu0 0.0
    %997 = vmatprep.subr.mxu0 0.0
    %998 = vmatpush2.msra.mxu0 0.0
    %999 = vmatprep.subr.mxu0 0.0
    %1000 = vmatpush2.msra.mxu0 0.0
    %1001 = vmatprep.subr.mxu0 0.0
    %1002 = vmatpush2.msra.mxu0 0.0
    %1003 = vmatprep.subr.mxu0 0.0
    %1004 = vmatpush2.msra.mxu0 0.0
    %1005 = vmatprep.subr.mxu0 0.0
    %1006 = vmatpush2.msra.mxu0 0.0
    %1007 = vmatprep.subr.mxu0 0.0
    %1008 = vmatpush2.msra.mxu0 0.0
    %1009 = vmatprep.subr.mxu0 0.0
    %1010 = vmatpush2.msra.mxu0 0.0
    %1011 = vmatprep.subr.mxu0 0.0
    %1012 = vmatpush2.msra.mxu0 0.0
    %1013 = vmatprep.mubr.f32.mxu0 0.0
    %1014 = vmatmul.mubr.f32.gmra.mxu0 %v947
    %v1015 = vpop.f32.mrf.mxu0
    %v1016 = vadd.f32 0.0, %v1015
    %v1017 = vpop.f32.mrf.mxu0
    %1018 = vdwg.mxu0
    %1020 = vrot.lane.b32.xlu0 %v398, 120
    %v1021 = vpop.permute.xlu0 %1020
    %v1024 = vsel %vm409, %v941, 0
    %1026 = vmatprep.subr.mxu0 0.0
    %1027 = vmatpush1.msra.mxu0 0.0
    %1028 = vmatprep.subr.mxu0 0.0
    %1029 = vmatpush1.msra.mxu0 0.0
    %1030 = vmatprep.subr.mxu0 0.0
    %1031 = vmatpush1.msra.mxu0 0.0
    %1032 = vmatprep.subr.mxu0 0.0
    %1033 = vmatpush1.msra.mxu0 0.0
    %1034 = vmatprep.subr.mxu0 0.0
    %1035 = vmatpush1.msra.mxu0 0.0
    %1036 = vmatprep.subr.mxu0 0.0
    %1037 = vmatpush1.msra.mxu0 0.0
    %1038 = vmatprep.subr.mxu0 0.0
    %1039 = vmatpush1.msra.mxu0 0.0
    %1040 = vmatprep.subr.mxu0 0.0
    %1041 = vmatpush1.msra.mxu0 0.0
    %1042 = vmatprep.subr.mxu0 0.0
    %1043 = vmatpush1.msra.mxu0 0.0
    %1044 = vmatprep.subr.mxu0 0.0
    %1045 = vmatpush1.msra.mxu0 0.0
    %1046 = vmatprep.subr.mxu0 0.0
    %1047 = vmatpush1.msra.mxu0 0.0
    %1048 = vmatprep.subr.mxu0 0.0
    %1049 = vmatpush1.msra.mxu0 0.0
    %1050 = vmatprep.subr.mxu0 0.0
    %1051 = vmatpush1.msra.mxu0 0.0
    %1052 = vmatprep.subr.mxu0 0.0
    %1053 = vmatpush1.msra.mxu0 0.0
    %1054 = vmatprep.subr.mxu0 0.0
    %1055 = vmatpush1.msra.mxu0 0.0
    %1056 = vmatprep.subr.mxu0 0.0
    %1057 = vmatpush1.msra.mxu0 %v1021
    %1058 = vmatprep.subr.mxu0 0.0
    %1059 = vmatpush2.msra.mxu0 0.0
    %1060 = vmatprep.subr.mxu0 0.0
    %1061 = vmatpush2.msra.mxu0 0.0
    %1062 = vmatprep.subr.mxu0 0.0
    %1063 = vmatpush2.msra.mxu0 0.0
    %1064 = vmatprep.subr.mxu0 0.0
    %1065 = vmatpush2.msra.mxu0 0.0
    %1066 = vmatprep.subr.mxu0 0.0
    %1067 = vmatpush2.msra.mxu0 0.0
    %1068 = vmatprep.subr.mxu0 0.0
    %1069 = vmatpush2.msra.mxu0 0.0
    %1070 = vmatprep.subr.mxu0 0.0
    %1071 = vmatpush2.msra.mxu0 0.0
    %1072 = vmatprep.subr.mxu0 0.0
    %1073 = vmatpush2.msra.mxu0 0.0
    %1074 = vmatprep.subr.mxu0 0.0
    %1075 = vmatpush2.msra.mxu0 0.0
    %1076 = vmatprep.subr.mxu0 0.0
    %1077 = vmatpush2.msra.mxu0 0.0
    %1078 = vmatprep.subr.mxu0 0.0
    %1079 = vmatpush2.msra.mxu0 0.0
    %1080 = vmatprep.subr.mxu0 0.0
    %1081 = vmatpush2.msra.mxu0 0.0
    %1082 = vmatprep.subr.mxu0 0.0
    %1083 = vmatpush2.msra.mxu0 0.0
    %1084 = vmatprep.subr.mxu0 0.0
    %1085 = vmatpush2.msra.mxu0 0.0
    %1086 = vmatprep.subr.mxu0 0.0
    %1087 = vmatpush2.msra.mxu0 0.0
    %1088 = vmatprep.subr.mxu0 0.0
    %1089 = vmatpush2.msra.mxu0 0.0
    %1090 = vmatprep.mubr.f32.mxu0 0.0
    %1091 = vmatmul.mubr.f32.gmra.mxu0 %v1024
    %v1092 = vpop.f32.mrf.mxu0
    %v1093 = vadd.f32 0.0, %v1092
    %v1094 = vpop.f32.mrf.mxu0
    %1095 = vdwg.mxu0
    %v1097 = vsel %vm409, %v1016, 0
    %v1100 = vsel %vm409, %v1093, 0
    %1102 = vmatprep.subr.mxu0 0.0
    %1103 = vmatpush1.msra.mxu0 0.0
    %1104 = vmatprep.subr.mxu0 0.0
    %1105 = vmatpush1.msra.mxu0 0.0
    %1106 = vmatprep.subr.mxu0 0.0
    %1107 = vmatpush1.msra.mxu0 0.0
    %1108 = vmatprep.subr.mxu0 0.0
    %1109 = vmatpush1.msra.mxu0 0.0
    %1110 = vmatprep.subr.mxu0 0.0
    %1111 = vmatpush1.msra.mxu0 0.0
    %1112 = vmatprep.subr.mxu0 0.0
    %1113 = vmatpush1.msra.mxu0 0.0
    %1114 = vmatprep.subr.mxu0 0.0
    %1115 = vmatpush1.msra.mxu0 0.0
    %1116 = vmatprep.subr.mxu0 0.0
    %1117 = vmatpush1.msra.mxu0 0.0
    %1118 = vmatprep.subr.mxu0 0.0
    %1119 = vmatpush1.msra.mxu0 0.0
    %1120 = vmatprep.subr.mxu0 0.0
    %1121 = vmatpush1.msra.mxu0 0.0
    %1122 = vmatprep.subr.mxu0 0.0
    %1123 = vmatpush1.msra.mxu0 0.0
    %1124 = vmatprep.subr.mxu0 0.0
    %1125 = vmatpush1.msra.mxu0 0.0
    %1126 = vmatprep.subr.mxu0 0.0
    %1127 = vmatpush1.msra.mxu0 0.0
    %1128 = vmatprep.subr.mxu0 0.0
    %1129 = vmatpush1.msra.mxu0 0.0
    %1130 = vmatprep.subr.mxu0 0.0
    %1131 = vmatpush1.msra.mxu0 0.0
    %1132 = vmatprep.subr.mxu0 0.0
    %1133 = vmatpush1.msra.mxu0 %v433
    %1134 = vmatprep.subr.mxu0 0.0
    %1135 = vmatpush2.msra.mxu0 0.0
    %1136 = vmatprep.subr.mxu0 0.0
    %1137 = vmatpush2.msra.mxu0 0.0
    %1138 = vmatprep.subr.mxu0 0.0
    %1139 = vmatpush2.msra.mxu0 0.0
    %1140 = vmatprep.subr.mxu0 0.0
    %1141 = vmatpush2.msra.mxu0 0.0
    %1142 = vmatprep.subr.mxu0 0.0
    %1143 = vmatpush2.msra.mxu0 0.0
    %1144 = vmatprep.subr.mxu0 0.0
    %1145 = vmatpush2.msra.mxu0 0.0
    %1146 = vmatprep.subr.mxu0 0.0
    %1147 = vmatpush2.msra.mxu0 0.0
    %1148 = vmatprep.subr.mxu0 0.0
    %1149 = vmatpush2.msra.mxu0 0.0
    %1150 = vmatprep.subr.mxu0 0.0
    %1151 = vmatpush2.msra.mxu0 0.0
    %1152 = vmatprep.subr.mxu0 0.0
    %1153 = vmatpush2.msra.mxu0 0.0
    %1154 = vmatprep.subr.mxu0 0.0
    %1155 = vmatpush2.msra.mxu0 0.0
    %1156 = vmatprep.subr.mxu0 0.0
    %1157 = vmatpush2.msra.mxu0 0.0
    %1158 = vmatprep.subr.mxu0 0.0
    %1159 = vmatpush2.msra.mxu0 0.0
    %1160 = vmatprep.subr.mxu0 0.0
    %1161 = vmatpush2.msra.mxu0 0.0
    %1162 = vmatprep.subr.mxu0 0.0
    %1163 = vmatpush2.msra.mxu0 0.0
    %1164 = vmatprep.subr.mxu0 0.0
    %1165 = vmatpush2.msra.mxu0 0.0
    %1166 = vmatprep.mubr.f32.mxu0 0.0
    %1167 = vmatmul.mubr.f32.gmra.mxu0 %v1097
    %v1168 = vpop.f32.mrf.mxu0
    %v1169 = vadd.f32 0.0, %v1168
    %v1170 = vpop.f32.mrf.mxu0
    %1171 = vmatprep.mubr.f32.mxu0 0.0
    %1172 = vmatmul.mubr.f32.gmra.mxu0 %v1100
    %v1173 = vpop.f32.mrf.mxu0
    %v1174 = vadd.f32 0.0, %v1173
    %v1175 = vpop.f32.mrf.mxu0
    %1176 = vdwg.mxu0
    %v1178 = vsel %vm409, %v684, 0
    %v1181 = vsel %vm409, %v757, 0
    %1183 = vmatprep.subr.mxu0 0.0
    %1184 = vmatpush1.msra.mxu0 0.0
    %1185 = vmatprep.subr.mxu0 0.0
    %1186 = vmatpush1.msra.mxu0 0.0
    %1187 = vmatprep.subr.mxu0 0.0
    %1188 = vmatpush1.msra.mxu0 0.0
    %1189 = vmatprep.subr.mxu0 0.0
    %1190 = vmatpush1.msra.mxu0 0.0
    %1191 = vmatprep.subr.mxu0 0.0
    %1192 = vmatpush1.msra.mxu0 0.0
    %1193 = vmatprep.subr.mxu0 0.0
    %1194 = vmatpush1.msra.mxu0 0.0
    %1195 = vmatprep.subr.mxu0 0.0
    %1196 = vmatpush1.msra.mxu0 0.0
    %1197 = vmatprep.subr.mxu0 0.0
    %1198 = vmatpush1.msra.mxu0 0.0
    %1199 = vmatprep.subr.mxu0 0.0
    %1200 = vmatpush1.msra.mxu0 0.0
    %1201 = vmatprep.subr.mxu0 0.0
    %1202 = vmatpush1.msra.mxu0 0.0
    %1203 = vmatprep.subr.mxu0 0.0
    %1204 = vmatpush1.msra.mxu0 0.0
    %1205 = vmatprep.subr.mxu0 0.0
    %1206 = vmatpush1.msra.mxu0 0.0
    %1207 = vmatprep.subr.mxu0 0.0
    %1208 = vmatpush1.msra.mxu0 0.0
    %1209 = vmatprep.subr.mxu0 0.0
    %1210 = vmatpush1.msra.mxu0 0.0
    %1211 = vmatprep.subr.mxu0 0.0
    %1212 = vmatpush1.msra.mxu0 0.0
    %1213 = vmatprep.subr.mxu0 0.0
    %1214 = vmatpush1.msra.mxu0 %v432
    %1215 = vmatprep.subr.mxu0 0.0
    %1216 = vmatpush2.msra.mxu0 0.0
    %1217 = vmatprep.subr.mxu0 0.0
    %1218 = vmatpush2.msra.mxu0 0.0
    %1219 = vmatprep.subr.mxu0 0.0
    %1220 = vmatpush2.msra.mxu0 0.0
    %1221 = vmatprep.subr.mxu0 0.0
    %1222 = vmatpush2.msra.mxu0 0.0
    %1223 = vmatprep.subr.mxu0 0.0
    %1224 = vmatpush2.msra.mxu0 0.0
    %1225 = vmatprep.subr.mxu0 0.0
    %1226 = vmatpush2.msra.mxu0 0.0
    %1227 = vmatprep.subr.mxu0 0.0
    %1228 = vmatpush2.msra.mxu0 0.0
    %1229 = vmatprep.subr.mxu0 0.0
    %1230 = vmatpush2.msra.mxu0 0.0
    %1231 = vmatprep.subr.mxu0 0.0
    %1232 = vmatpush2.msra.mxu0 0.0
    %1233 = vmatprep.subr.mxu0 0.0
    %1234 = vmatpush2.msra.mxu0 0.0
    %1235 = vmatprep.subr.mxu0 0.0
    %1236 = vmatpush2.msra.mxu0 0.0
    %1237 = vmatprep.subr.mxu0 0.0
    %1238 = vmatpush2.msra.mxu0 0.0
    %1239 = vmatprep.subr.mxu0 0.0
    %1240 = vmatpush2.msra.mxu0 0.0
    %1241 = vmatprep.subr.mxu0 0.0
    %1242 = vmatpush2.msra.mxu0 0.0
    %1243 = vmatprep.subr.mxu0 0.0
    %1244 = vmatpush2.msra.mxu0 0.0
    %1245 = vmatprep.subr.mxu0 0.0
    %1246 = vmatpush2.msra.mxu0 0.0
    %1247 = vmatprep.mubr.f32.mxu0 0.0
    %1248 = vmatmul.mubr.f32.gmra.mxu0 %v1178
    %v1249 = vpop.f32.mrf.mxu0
    %v1250 = vadd.f32 %v1169, %v1249
    %v1251 = vpop.f32.mrf.mxu0
    %1252 = vmatprep.mubr.f32.mxu0 0.0
    %1253 = vmatmul.mubr.f32.gmra.mxu0 %v1181
    %v1254 = vpop.f32.mrf.mxu0
    %v1255 = vadd.f32 %v1174, %v1254
    %v1256 = vpop.f32.mrf.mxu0
    %1257 = vdwg.mxu0
    %1258 = vrot.lane.b32.xlu0 %v221, 112
    %v1259 = vpop.permute.xlu0 %1258
    %1260 = vrot.lane.b32.xlu0 %v307, 112
    %v1261 = vpop.permute.xlu0 %1260
    %v1262 = vsel %vm409, %v1259, 0
    %v1264 = vsel %vm409, %v1261, 0
    %1266 = vmatprep.subr.mxu0 0.0
    %1267 = vmatpush1.xpose.msra.mxu0 0.0
    %1268 = vmatprep.subr.mxu0 0.0
    %1269 = vmatpush1.xpose.msra.mxu0 0.0
    %1270 = vmatprep.subr.mxu0 0.0
    %1271 = vmatpush1.xpose.msra.mxu0 0.0
    %1272 = vmatprep.subr.mxu0 0.0
    %1273 = vmatpush1.xpose.msra.mxu0 0.0
    %1274 = vmatprep.subr.mxu0 0.0
    %1275 = vmatpush1.xpose.msra.mxu0 0.0
    %1276 = vmatprep.subr.mxu0 0.0
    %1277 = vmatpush1.xpose.msra.mxu0 0.0
    %1278 = vmatprep.subr.mxu0 0.0
    %1279 = vmatpush1.xpose.msra.mxu0 0.0
    %1280 = vmatprep.subr.mxu0 0.0
    %1281 = vmatpush1.xpose.msra.mxu0 0.0
    %1282 = vmatprep.subr.mxu0 0.0
    %1283 = vmatpush1.xpose.msra.mxu0 0.0
    %1284 = vmatprep.subr.mxu0 0.0
    %1285 = vmatpush1.xpose.msra.mxu0 0.0
    %1286 = vmatprep.subr.mxu0 0.0
    %1287 = vmatpush1.xpose.msra.mxu0 0.0
    %1288 = vmatprep.subr.mxu0 0.0
    %1289 = vmatpush1.xpose.msra.mxu0 0.0
    %1290 = vmatprep.subr.mxu0 0.0
    %1291 = vmatpush1.xpose.msra.mxu0 0.0
    %1292 = vmatprep.subr.mxu0 0.0
    %1293 = vmatpush1.xpose.msra.mxu0 0.0
    %1294 = vmatprep.subr.mxu0 0.0
    %1295 = vmatpush1.xpose.msra.mxu0 0.0
    %1296 = vmatprep.subr.mxu0 0.0
    %1297 = vmatpush1.xpose.msra.mxu0 %v1264
    %1298 = vmatprep.subr.mxu0 0.0
    %1299 = vmatpush2.xpose.msra.mxu0 0.0
    %1300 = vmatprep.subr.mxu0 0.0
    %1301 = vmatpush2.xpose.msra.mxu0 0.0
    %1302 = vmatprep.subr.mxu0 0.0
    %1303 = vmatpush2.xpose.msra.mxu0 0.0
    %1304 = vmatprep.subr.mxu0 0.0
    %1305 = vmatpush2.xpose.msra.mxu0 0.0
    %1306 = vmatprep.subr.mxu0 0.0
    %1307 = vmatpush2.xpose.msra.mxu0 0.0
    %1308 = vmatprep.subr.mxu0 0.0
    %1309 = vmatpush2.xpose.msra.mxu0 0.0
    %1310 = vmatprep.subr.mxu0 0.0
    %1311 = vmatpush2.xpose.msra.mxu0 0.0
    %1312 = vmatprep.subr.mxu0 0.0
    %1313 = vmatpush2.xpose.msra.mxu0 0.0
    %1314 = vmatprep.subr.mxu0 0.0
    %1315 = vmatpush2.xpose.msra.mxu0 0.0
    %1316 = vmatprep.subr.mxu0 0.0
    %1317 = vmatpush2.xpose.msra.mxu0 0.0
    %1318 = vmatprep.subr.mxu0 0.0
    %1319 = vmatpush2.xpose.msra.mxu0 0.0
    %1320 = vmatprep.subr.mxu0 0.0
    %1321 = vmatpush2.xpose.msra.mxu0 0.0
    %1322 = vmatprep.subr.mxu0 0.0
    %1323 = vmatpush2.xpose.msra.mxu0 0.0
    %1324 = vmatprep.subr.mxu0 0.0
    %1325 = vmatpush2.xpose.msra.mxu0 0.0
    %1326 = vmatprep.subr.mxu0 0.0
    %1327 = vmatpush2.xpose.msra.mxu0 0.0
    %1328 = vmatprep.subr.mxu0 0.0
    %1329 = vmatpush2.xpose.msra.mxu0 0.0
    %1330 = vmatprep.mubr.f32.mxu0 0.0
    %1331 = vmatmul.mubr.f32.gmra.mxu0 %v1262
    %v1332 = vpop.f32.mrf.mxu0
    %v1333 = vadd.f32 0.0, %v1332
    %v1334 = vpop.f32.mrf.mxu0
    %1335 = vdwg.mxu0
    %1336 = vrot.lane.b32.xlu0 %v226, 112
    %v1337 = vpop.permute.xlu0 %1336
    %1338 = vrot.lane.b32.xlu0 %v312, 112
    %v1339 = vpop.permute.xlu0 %1338
    %v1340 = vsel %vm409, %v1337, 0
    %v1342 = vsel %vm409, %v1339, 0
    %1344 = vmatprep.subr.mxu0 0.0
    %1345 = vmatpush1.xpose.msra.mxu0 0.0
    %1346 = vmatprep.subr.mxu0 0.0
    %1347 = vmatpush1.xpose.msra.mxu0 0.0
    %1348 = vmatprep.subr.mxu0 0.0
    %1349 = vmatpush1.xpose.msra.mxu0 0.0
    %1350 = vmatprep.subr.mxu0 0.0
    %1351 = vmatpush1.xpose.msra.mxu0 0.0
    %1352 = vmatprep.subr.mxu0 0.0
    %1353 = vmatpush1.xpose.msra.mxu0 0.0
    %1354 = vmatprep.subr.mxu0 0.0
    %1355 = vmatpush1.xpose.msra.mxu0 0.0
    %1356 = vmatprep.subr.mxu0 0.0
    %1357 = vmatpush1.xpose.msra.mxu0 0.0
    %1358 = vmatprep.subr.mxu0 0.0
    %1359 = vmatpush1.xpose.msra.mxu0 0.0
    %1360 = vmatprep.subr.mxu0 0.0
    %1361 = vmatpush1.xpose.msra.mxu0 0.0
    %1362 = vmatprep.subr.mxu0 0.0
    %1363 = vmatpush1.xpose.msra.mxu0 0.0
    %1364 = vmatprep.subr.mxu0 0.0
    %1365 = vmatpush1.xpose.msra.mxu0 0.0
    %1366 = vmatprep.subr.mxu0 0.0
    %1367 = vmatpush1.xpose.msra.mxu0 0.0
    %1368 = vmatprep.subr.mxu0 0.0
    %1369 = vmatpush1.xpose.msra.mxu0 0.0
    %1370 = vmatprep.subr.mxu0 0.0
    %1371 = vmatpush1.xpose.msra.mxu0 0.0
    %1372 = vmatprep.subr.mxu0 0.0
    %1373 = vmatpush1.xpose.msra.mxu0 0.0
    %1374 = vmatprep.subr.mxu0 0.0
    %1375 = vmatpush1.xpose.msra.mxu0 %v1342
    %1376 = vmatprep.subr.mxu0 0.0
    %1377 = vmatpush2.xpose.msra.mxu0 0.0
    %1378 = vmatprep.subr.mxu0 0.0
    %1379 = vmatpush2.xpose.msra.mxu0 0.0
    %1380 = vmatprep.subr.mxu0 0.0
    %1381 = vmatpush2.xpose.msra.mxu0 0.0
    %1382 = vmatprep.subr.mxu0 0.0
    %1383 = vmatpush2.xpose.msra.mxu0 0.0
    %1384 = vmatprep.subr.mxu0 0.0
    %1385 = vmatpush2.xpose.msra.mxu0 0.0
    %1386 = vmatprep.subr.mxu0 0.0
    %1387 = vmatpush2.xpose.msra.mxu0 0.0
    %1388 = vmatprep.subr.mxu0 0.0
    %1389 = vmatpush2.xpose.msra.mxu0 0.0
    %1390 = vmatprep.subr.mxu0 0.0
    %1391 = vmatpush2.xpose.msra.mxu0 0.0
    %1392 = vmatprep.subr.mxu0 0.0
    %1393 = vmatpush2.xpose.msra.mxu0 0.0
    %1394 = vmatprep.subr.mxu0 0.0
    %1395 = vmatpush2.xpose.msra.mxu0 0.0
    %1396 = vmatprep.subr.mxu0 0.0
    %1397 = vmatpush2.xpose.msra.mxu0 0.0
    %1398 = vmatprep.subr.mxu0 0.0
    %1399 = vmatpush2.xpose.msra.mxu0 0.0
    %1400 = vmatprep.subr.mxu0 0.0
    %1401 = vmatpush2.xpose.msra.mxu0 0.0
    %1402 = vmatprep.subr.mxu0 0.0
    %1403 = vmatpush2.xpose.msra.mxu0 0.0
    %1404 = vmatprep.subr.mxu0 0.0
    %1405 = vmatpush2.xpose.msra.mxu0 0.0
    %1406 = vmatprep.subr.mxu0 0.0
    %1407 = vmatpush2.xpose.msra.mxu0 0.0
    %1408 = vmatprep.mubr.f32.mxu0 0.0
    %1409 = vmatmul.mubr.f32.gmra.mxu0 %v1340
    %v1410 = vpop.f32.mrf.mxu0
    %v1411 = vadd.f32 0.0, %v1410
    %v1412 = vpop.f32.mrf.mxu0
    %1413 = vdwg.mxu0
    %v1414 = vmul.f32 %v1333, 0.125
    %v1415 = vmul.f32 %v1411, 0.125
    %v1416 = vadd.f32 %v1414, %v430
    %v1417 = vadd.f32 %v1415, %v431
    %v1418 = vsel %vm409, %v1416, -inf
    %1419 = vmax.xlane.f32.xlu0 %v1418
    %v1420 = vpop.xlane.xlu0 %1419
    %v1421 = vsel %vm409, %v1417, -inf
    %1422 = vmax.xlane.f32.xlu0 %v1421
    %v1423 = vpop.xlane.xlu0 %1422
    %v1424 = vsub.f32 %v1416, %v1420
    %v1425 = vsub.f32 %v1417, %v1423
    %v1426 = vmul.f32 %v1424, 1.442695
    %v1427 = vpow.pop %v1426
    %v1428 = vmul.f32 %v1425, 1.442695
    %v1429 = vpow.pop %v1428
    %v1430 = vsel %vm409, %v1427, 0.0
    %1431 = vadd.xlane.f32.xlu0 %v1430
    %v1432 = vpop.xlane.xlu0 %1431
    %v1433 = vsel %vm409, %v1429, 0.0
    %1434 = vadd.xlane.f32.xlu0 %v1433
    %v1435 = vpop.xlane.xlu0 %1434
    %v1436 = vrcp.pop %v1432
    %v1437 = vrcp.pop %v1435
    %v1438 = vmul.f32 %v1427, %v1436
    %v1439 = vmul.f32 %v1429, %v1437
    %1440 = vrot.lane.b32.xlu0 %v393, 112
    %v1441 = vpop.permute.xlu0 %1440
    %v1444 = vsel %vm409, %v1438, 0
    %1446 = vmatprep.subr.mxu0 0.0
    %1447 = vmatpush1.msra.mxu0 0.0
    %1448 = vmatprep.subr.mxu0 0.0
    %1449 = vmatpush1.msra.mxu0 0.0
    %1450 = vmatprep.subr.mxu0 0.0
    %1451 = vmatpush1.msra.mxu0 0.0
    %1452 = vmatprep.subr.mxu0 0.0
    %1453 = vmatpush1.msra.mxu0 0.0
    %1454 = vmatprep.subr.mxu0 0.0
    %1455 = vmatpush1.msra.mxu0 0.0
    %1456 = vmatprep.subr.mxu0 0.0
    %1457 = vmatpush1.msra.mxu0 0.0
    %1458 = vmatprep.subr.mxu0 0.0
    %1459 = vmatpush1.msra.mxu0 0.0
    %1460 = vmatprep.subr.mxu0 0.0
    %1461 = vmatpush1.msra.mxu0 0.0
    %1462 = vmatprep.subr.mxu0 0.0
    %1463 = vmatpush1.msra.mxu0 0.0
    %1464 = vmatprep.subr.mxu0 0.0
    %1465 = vmatpush1.msra.mxu0 0.0
    %1466 = vmatprep.subr.mxu0 0.0
    %1467 = vmatpush1.msra.mxu0 0.0
    %1468 = vmatprep.subr.mxu0 0.0
    %1469 = vmatpush1.msra.mxu0 0.0
    %1470 = vmatprep.subr.mxu0 0.0
    %1471 = vmatpush1.msra.mxu0 0.0
    %1472 = vmatprep.subr.mxu0 0.0
    %1473 = vmatpush1.msra.mxu0 0.0
    %1474 = vmatprep.subr.mxu0 0.0
    %1475 = vmatpush1.msra.mxu0 0.0
    %1476 = vmatprep.subr.mxu0 0.0
    %1477 = vmatpush1.msra.mxu0 %v1441
    %1478 = vmatprep.subr.mxu0 0.0
    %1479 = vmatpush2.msra.mxu0 0.0
    %1480 = vmatprep.subr.mxu0 0.0
    %1481 = vmatpush2.msra.mxu0 0.0
    %1482 = vmatprep.subr.mxu0 0.0
    %1483 = vmatpush2.msra.mxu0 0.0
    %1484 = vmatprep.subr.mxu0 0.0
    %1485 = vmatpush2.msra.mxu0 0.0
    %1486 = vmatprep.subr.mxu0 0.0
    %1487 = vmatpush2.msra.mxu0 0.0
    %1488 = vmatprep.subr.mxu0 0.0
    %1489 = vmatpush2.msra.mxu0 0.0
    %1490 = vmatprep.subr.mxu0 0.0
    %1491 = vmatpush2.msra.mxu0 0.0
    %1492 = vmatprep.subr.mxu0 0.0
    %1493 = vmatpush2.msra.mxu0 0.0
    %1494 = vmatprep.subr.mxu0 0.0
    %1495 = vmatpush2.msra.mxu0 0.0
    %1496 = vmatprep.subr.mxu0 0.0
    %1497 = vmatpush2.msra.mxu0 0.0
    %1498 = vmatprep.subr.mxu0 0.0
    %1499 = vmatpush2.msra.mxu0 0.0
    %1500 = vmatprep.subr.mxu0 0.0
    %1501 = vmatpush2.msra.mxu0 0.0
    %1502 = vmatprep.subr.mxu0 0.0
    %1503 = vmatpush2.msra.mxu0 0.0
    %1504 = vmatprep.subr.mxu0 0.0
    %1505 = vmatpush2.msra.mxu0 0.0
    %1506 = vmatprep.subr.mxu0 0.0
    %1507 = vmatpush2.msra.mxu0 0.0
    %1508 = vmatprep.subr.mxu0 0.0
    %1509 = vmatpush2.msra.mxu0 0.0
    %1510 = vmatprep.mubr.f32.mxu0 0.0
    %1511 = vmatmul.mubr.f32.gmra.mxu0 %v1444
    %v1512 = vpop.f32.mrf.mxu0
    %v1513 = vadd.f32 0.0, %v1512
    %v1514 = vpop.f32.mrf.mxu0
    %1515 = vdwg.mxu0
    %1516 = vrot.lane.b32.xlu0 %v398, 112
    %v1517 = vpop.permute.xlu0 %1516
    %v1520 = vsel %vm409, %v1439, 0
    %1522 = vmatprep.subr.mxu0 0.0
    %1523 = vmatpush1.msra.mxu0 0.0
    %1524 = vmatprep.subr.mxu0 0.0
    %1525 = vmatpush1.msra.mxu0 0.0
    %1526 = vmatprep.subr.mxu0 0.0
    %1527 = vmatpush1.msra.mxu0 0.0
    %1528 = vmatprep.subr.mxu0 0.0
    %1529 = vmatpush1.msra.mxu0 0.0
    %1530 = vmatprep.subr.mxu0 0.0
    %1531 = vmatpush1.msra.mxu0 0.0
    %1532 = vmatprep.subr.mxu0 0.0
    %1533 = vmatpush1.msra.mxu0 0.0
    %1534 = vmatprep.subr.mxu0 0.0
    %1535 = vmatpush1.msra.mxu0 0.0
    %1536 = vmatprep.subr.mxu0 0.0
    %1537 = vmatpush1.msra.mxu0 0.0
    %1538 = vmatprep.subr.mxu0 0.0
    %1539 = vmatpush1.msra.mxu0 0.0
    %1540 = vmatprep.subr.mxu0 0.0
    %1541 = vmatpush1.msra.mxu0 0.0
    %1542 = vmatprep.subr.mxu0 0.0
    %1543 = vmatpush1.msra.mxu0 0.0
    %1544 = vmatprep.subr.mxu0 0.0
    %1545 = vmatpush1.msra.mxu0 0.0
    %1546 = vmatprep.subr.mxu0 0.0
    %1547 = vmatpush1.msra.mxu0 0.0
    %1548 = vmatprep.subr.mxu0 0.0
    %1549 = vmatpush1.msra.mxu0 0.0
    %1550 = vmatprep.subr.mxu0 0.0
    %1551 = vmatpush1.msra.mxu0 0.0
    %1552 = vmatprep.subr.mxu0 0.0
    %1553 = vmatpush1.msra.mxu0 %v1517
    %1554 = vmatprep.subr.mxu0 0.0
    %1555 = vmatpush2.msra.mxu0 0.0
    %1556 = vmatprep.subr.mxu0 0.0
    %1557 = vmatpush2.msra.mxu0 0.0
    %1558 = vmatprep.subr.mxu0 0.0
    %1559 = vmatpush2.msra.mxu0 0.0
    %1560 = vmatprep.subr.mxu0 0.0
    %1561 = vmatpush2.msra.mxu0 0.0
    %1562 = vmatprep.subr.mxu0 0.0
    %1563 = vmatpush2.msra.mxu0 0.0
    %1564 = vmatprep.subr.mxu0 0.0
    %1565 = vmatpush2.msra.mxu0 0.0
    %1566 = vmatprep.subr.mxu0 0.0
    %1567 = vmatpush2.msra.mxu0 0.0
    %1568 = vmatprep.subr.mxu0 0.0
    %1569 = vmatpush2.msra.mxu0 0.0
    %1570 = vmatprep.subr.mxu0 0.0
    %1571 = vmatpush2.msra.mxu0 0.0
    %1572 = vmatprep.subr.mxu0 0.0
    %1573 = vmatpush2.msra.mxu0 0.0
    %1574 = vmatprep.subr.mxu0 0.0
    %1575 = vmatpush2.msra.mxu0 0.0
    %1576 = vmatprep.subr.mxu0 0.0
    %1577 = vmatpush2.msra.mxu0 0.0
    %1578 = vmatprep.subr.mxu0 0.0
    %1579 = vmatpush2.msra.mxu0 0.0
    %1580 = vmatprep.subr.mxu0 0.0
    %1581 = vmatpush2.msra.mxu0 0.0
    %1582 = vmatprep.subr.mxu0 0.0
    %1583 = vmatpush2.msra.mxu0 0.0
    %1584 = vmatprep.subr.mxu0 0.0
    %1585 = vmatpush2.msra.mxu0 0.0
    %1586 = vmatprep.mubr.f32.mxu0 0.0
    %1587 = vmatmul.mubr.f32.gmra.mxu0 %v1520
    %v1588 = vpop.f32.mrf.mxu0
    %v1589 = vadd.f32 0.0, %v1588
    %v1590 = vpop.f32.mrf.mxu0
    %1591 = vdwg.mxu0
    %v1593 = vsel %vm409, %v1513, 0
    %v1596 = vsel %vm409, %v1589, 0
    %1598 = vmatprep.subr.mxu0 0.0
    %1599 = vmatpush1.msra.mxu0 0.0
    %1600 = vmatprep.subr.mxu0 0.0
    %1601 = vmatpush1.msra.mxu0 0.0
    %1602 = vmatprep.subr.mxu0 0.0
    %1603 = vmatpush1.msra.mxu0 0.0
    %1604 = vmatprep.subr.mxu0 0.0
    %1605 = vmatpush1.msra.mxu0 0.0
    %1606 = vmatprep.subr.mxu0 0.0
    %1607 = vmatpush1.msra.mxu0 0.0
    %1608 = vmatprep.subr.mxu0 0.0
    %1609 = vmatpush1.msra.mxu0 0.0
    %1610 = vmatprep.subr.mxu0 0.0
    %1611 = vmatpush1.msra.mxu0 0.0
    %1612 = vmatprep.subr.mxu0 0.0
    %1613 = vmatpush1.msra.mxu0 0.0
    %1614 = vmatprep.subr.mxu0 0.0
    %1615 = vmatpush1.msra.mxu0 0.0
    %1616 = vmatprep.subr.mxu0 0.0
    %1617 = vmatpush1.msra.mxu0 0.0
    %1618 = vmatprep.subr.mxu0 0.0
    %1619 = vmatpush1.msra.mxu0 0.0
    %1620 = vmatprep.subr.mxu0 0.0
    %1621 = vmatpush1.msra.mxu0 0.0
    %1622 = vmatprep.subr.mxu0 0.0
    %1623 = vmatpush1.msra.mxu0 0.0
    %1624 = vmatprep.subr.mxu0 0.0
    %1625 = vmatpush1.msra.mxu0 0.0
    %1626 = vmatprep.subr.mxu0 0.0
    %1627 = vmatpush1.msra.mxu0 0.0
    %1628 = vmatprep.subr.mxu0 0.0
    %1629 = vmatpush1.msra.mxu0 %v434
    %1630 = vmatprep.subr.mxu0 0.0
    %1631 = vmatpush2.msra.mxu0 0.0
    %1632 = vmatprep.subr.mxu0 0.0
    %1633 = vmatpush2.msra.mxu0 0.0
    %1634 = vmatprep.subr.mxu0 0.0
    %1635 = vmatpush2.msra.mxu0 0.0
    %1636 = vmatprep.subr.mxu0 0.0
    %1637 = vmatpush2.msra.mxu0 0.0
    %1638 = vmatprep.subr.mxu0 0.0
    %1639 = vmatpush2.msra.mxu0 0.0
    %1640 = vmatprep.subr.mxu0 0.0
    %1641 = vmatpush2.msra.mxu0 0.0
    %1642 = vmatprep.subr.mxu0 0.0
    %1643 = vmatpush2.msra.mxu0 0.0
    %1644 = vmatprep.subr.mxu0 0.0
    %1645 = vmatpush2.msra.mxu0 0.0
    %1646 = vmatprep.subr.mxu0 0.0
    %1647 = vmatpush2.msra.mxu0 0.0
    %1648 = vmatprep.subr.mxu0 0.0
    %1649 = vmatpush2.msra.mxu0 0.0
    %1650 = vmatprep.subr.mxu0 0.0
    %1651 = vmatpush2.msra.mxu0 0.0
    %1652 = vmatprep.subr.mxu0 0.0
    %1653 = vmatpush2.msra.mxu0 0.0
    %1654 = vmatprep.subr.mxu0 0.0
    %1655 = vmatpush2.msra.mxu0 0.0
    %1656 = vmatprep.subr.mxu0 0.0
    %1657 = vmatpush2.msra.mxu0 0.0
    %1658 = vmatprep.subr.mxu0 0.0
    %1659 = vmatpush2.msra.mxu0 0.0
    %1660 = vmatprep.subr.mxu0 0.0
    %1661 = vmatpush2.msra.mxu0 0.0
    %1662 = vmatprep.mubr.f32.mxu0 0.0
    %1663 = vmatmul.mubr.f32.gmra.mxu0 %v1593
    %v1664 = vpop.f32.mrf.mxu0
    %v1665 = vadd.f32 0.0, %v1664
    %v1666 = vpop.f32.mrf.mxu0
    %1667 = vmatprep.mubr.f32.mxu0 0.0
    %1668 = vmatmul.mubr.f32.gmra.mxu0 %v1596
    %v1669 = vpop.f32.mrf.mxu0
    %v1670 = vadd.f32 0.0, %v1669
    %v1671 = vpop.f32.mrf.mxu0
    %1672 = vdwg.mxu0
    %v1673 = vadd.f32 %v1250, %v1665
    %v1674 = vadd.f32 %v1255, %v1670
    %1675 = vrot.lane.b32.xlu0 %v221, 104
    %v1676 = vpop.permute.xlu0 %1675
    %1677 = vrot.lane.b32.xlu0 %v307, 104
    %v1678 = vpop.permute.xlu0 %1677
    %v1679 = vsel %vm409, %v1676, 0
    %v1681 = vsel %vm409, %v1678, 0
    %1683 = vmatprep.subr.mxu0 0.0
    %1684 = vmatpush1.xpose.msra.mxu0 0.0
    %1685 = vmatprep.subr.mxu0 0.0
    %1686 = vmatpush1.xpose.msra.mxu0 0.0
    %1687 = vmatprep.subr.mxu0 0.0
    %1688 = vmatpush1.xpose.msra.mxu0 0.0
    %1689 = vmatprep.subr.mxu0 0.0
    %1690 = vmatpush1.xpose.msra.mxu0 0.0
    %1691 = vmatprep.subr.mxu0 0.0
    %1692 = vmatpush1.xpose.msra.mxu0 0.0
    %1693 = vmatprep.subr.mxu0 0.0
    %1694 = vmatpush1.xpose.msra.mxu0 0.0
    %1695 = vmatprep.subr.mxu0 0.0
    %1696 = vmatpush1.xpose.msra.mxu0 0.0
    %1697 = vmatprep.subr.mxu0 0.0
    %1698 = vmatpush1.xpose.msra.mxu0 0.0
    %1699 = vmatprep.subr.mxu0 0.0
    %1700 = vmatpush1.xpose.msra.mxu0 0.0
    %1701 = vmatprep.subr.mxu0 0.0
    %1702 = vmatpush1.xpose.msra.mxu0 0.0
    %1703 = vmatprep.subr.mxu0 0.0
    %1704 = vmatpush1.xpose.msra.mxu0 0.0
    %1705 = vmatprep.subr.mxu0 0.0
    %1706 = vmatpush1.xpose.msra.mxu0 0.0
    %1707 = vmatprep.subr.mxu0 0.0
    %1708 = vmatpush1.xpose.msra.mxu0 0.0
    %1709 = vmatprep.subr.mxu0 0.0
    %1710 = vmatpush1.xpose.msra.mxu0 0.0
    %1711 = vmatprep.subr.mxu0 0.0
    %1712 = vmatpush1.xpose.msra.mxu0 0.0
    %1713 = vmatprep.subr.mxu0 0.0
    %1714 = vmatpush1.xpose.msra.mxu0 %v1681
    %1715 = vmatprep.subr.mxu0 0.0
    %1716 = vmatpush2.xpose.msra.mxu0 0.0
    %1717 = vmatprep.subr.mxu0 0.0
    %1718 = vmatpush2.xpose.msra.mxu0 0.0
    %1719 = vmatprep.subr.mxu0 0.0
    %1720 = vmatpush2.xpose.msra.mxu0 0.0
    %1721 = vmatprep.subr.mxu0 0.0
    %1722 = vmatpush2.xpose.msra.mxu0 0.0
    %1723 = vmatprep.subr.mxu0 0.0
    %1724 = vmatpush2.xpose.msra.mxu0 0.0
    %1725 = vmatprep.subr.mxu0 0.0
    %1726 = vmatpush2.xpose.msra.mxu0 0.0
    %1727 = vmatprep.subr.mxu0 0.0
    %1728 = vmatpush2.xpose.msra.mxu0 0.0
    %1729 = vmatprep.subr.mxu0 0.0
    %1730 = vmatpush2.xpose.msra.mxu0 0.0
    %1731 = vmatprep.subr.mxu0 0.0
    %1732 = vmatpush2.xpose.msra.mxu0 0.0
    %1733 = vmatprep.subr.mxu0 0.0
    %1734 = vmatpush2.xpose.msra.mxu0 0.0
    %1735 = vmatprep.subr.mxu0 0.0
    %1736 = vmatpush2.xpose.msra.mxu0 0.0
    %1737 = vmatprep.subr.mxu0 0.0
    %1738 = vmatpush2.xpose.msra.mxu0 0.0
    %1739 = vmatprep.subr.mxu0 0.0
    %1740 = vmatpush2.xpose.msra.mxu0 0.0
    %1741 = vmatprep.subr.mxu0 0.0
    %1742 = vmatpush2.xpose.msra.mxu0 0.0
    %1743 = vmatprep.subr.mxu0 0.0
    %1744 = vmatpush2.xpose.msra.mxu0 0.0
    %1745 = vmatprep.subr.mxu0 0.0
    %1746 = vmatpush2.xpose.msra.mxu0 0.0
    %1747 = vmatprep.mubr.f32.mxu0 0.0
    %1748 = vmatmul.mubr.f32.gmra.mxu0 %v1679
    %v1749 = vpop.f32.mrf.mxu0
    %v1750 = vadd.f32 0.0, %v1749
    %v1751 = vpop.f32.mrf.mxu0
    %1752 = vdwg.mxu0
    %1753 = vrot.lane.b32.xlu0 %v226, 104
    %v1754 = vpop.permute.xlu0 %1753
    %1755 = vrot.lane.b32.xlu0 %v312, 104
    %v1756 = vpop.permute.xlu0 %1755
    %v1757 = vsel %vm409, %v1754, 0
    %v1759 = vsel %vm409, %v1756, 0
    %1761 = vmatprep.subr.mxu0 0.0
    %1762 = vmatpush1.xpose.msra.mxu0 0.0
    %1763 = vmatprep.subr.mxu0 0.0
    %1764 = vmatpush1.xpose.msra.mxu0 0.0
    %1765 = vmatprep.subr.mxu0 0.0
    %1766 = vmatpush1.xpose.msra.mxu0 0.0
    %1767 = vmatprep.subr.mxu0 0.0
    %1768 = vmatpush1.xpose.msra.mxu0 0.0
    %1769 = vmatprep.subr.mxu0 0.0
    %1770 = vmatpush1.xpose.msra.mxu0 0.0
    %1771 = vmatprep.subr.mxu0 0.0
    %1772 = vmatpush1.xpose.msra.mxu0 0.0
    %1773 = vmatprep.subr.mxu0 0.0
    %1774 = vmatpush1.xpose.msra.mxu0 0.0
    %1775 = vmatprep.subr.mxu0 0.0
    %1776 = vmatpush1.xpose.msra.mxu0 0.0
    %1777 = vmatprep.subr.mxu0 0.0
    %1778 = vmatpush1.xpose.msra.mxu0 0.0
    %1779 = vmatprep.subr.mxu0 0.0
    %1780 = vmatpush1.xpose.msra.mxu0 0.0
    %1781 = vmatprep.subr.mxu0 0.0
    %1782 = vmatpush1.xpose.msra.mxu0 0.0
    %1783 = vmatprep.subr.mxu0 0.0
    %1784 = vmatpush1.xpose.msra.mxu0 0.0
    %1785 = vmatprep.subr.mxu0 0.0
    %1786 = vmatpush1.xpose.msra.mxu0 0.0
    %1787 = vmatprep.subr.mxu0 0.0
    %1788 = vmatpush1.xpose.msra.mxu0 0.0
    %1789 = vmatprep.subr.mxu0 0.0
    %1790 = vmatpush1.xpose.msra.mxu0 0.0
    %1791 = vmatprep.subr.mxu0 0.0
    %1792 = vmatpush1.xpose.msra.mxu0 %v1759
    %1793 = vmatprep.subr.mxu0 0.0
    %1794 = vmatpush2.xpose.msra.mxu0 0.0
    %1795 = vmatprep.subr.mxu0 0.0
    %1796 = vmatpush2.xpose.msra.mxu0 0.0
    %1797 = vmatprep.subr.mxu0 0.0
    %1798 = vmatpush2.xpose.msra.mxu0 0.0
    %1799 = vmatprep.subr.mxu0 0.0
    %1800 = vmatpush2.xpose.msra.mxu0 0.0
    %1801 = vmatprep.subr.mxu0 0.0
    %1802 = vmatpush2.xpose.msra.mxu0 0.0
    %1803 = vmatprep.subr.mxu0 0.0
    %1804 = vmatpush2.xpose.msra.mxu0 0.0
    %1805 = vmatprep.subr.mxu0 0.0
    %1806 = vmatpush2.xpose.msra.mxu0 0.0
    %1807 = vmatprep.subr.mxu0 0.0
    %1808 = vmatpush2.xpose.msra.mxu0 0.0
    %1809 = vmatprep.subr.mxu0 0.0
    %1810 = vmatpush2.xpose.msra.mxu0 0.0
    %1811 = vmatprep.subr.mxu0 0.0
    %1812 = vmatpush2.xpose.msra.mxu0 0.0
    %1813 = vmatprep.subr.mxu0 0.0
    %1814 = vmatpush2.xpose.msra.mxu0 0.0
    %1815 = vmatprep.subr.mxu0 0.0
    %1816 = vmatpush2.xpose.msra.mxu0 0.0
    %1817 = vmatprep.subr.mxu0 0.0
    %1818 = vmatpush2.xpose.msra.mxu0 0.0
    %1819 = vmatprep.subr.mxu0 0.0
    %1820 = vmatpush2.xpose.msra.mxu0 0.0
    %1821 = vmatprep.subr.mxu0 0.0
    %1822 = vmatpush2.xpose.msra.mxu0 0.0
    %1823 = vmatprep.subr.mxu0 0.0
    %1824 = vmatpush2.xpose.msra.mxu0 0.0
    %1825 = vmatprep.mubr.f32.mxu0 0.0
    %1826 = vmatmul.mubr.f32.gmra.mxu0 %v1757
    %v1827 = vpop.f32.mrf.mxu0
    %v1828 = vadd.f32 0.0, %v1827
    %v1829 = vpop.f32.mrf.mxu0
    %1830 = vdwg.mxu0
    %v1831 = vmul.f32 %v1750, 0.125
    %v1832 = vmul.f32 %v1828, 0.125
    %v1833 = vadd.f32 %v1831, %v430
    %v1834 = vadd.f32 %v1832, %v431
    %v1835 = vsel %vm409, %v1833, -inf
    %1836 = vmax.xlane.f32.xlu0 %v1835
    %v1837 = vpop.xlane.xlu0 %1836
    %v1838 = vsel %vm409, %v1834, -inf
    %1839 = vmax.xlane.f32.xlu0 %v1838
    %v1840 = vpop.xlane.xlu0 %1839
    %v1841 = vsub.f32 %v1833, %v1837
    %v1842 = vsub.f32 %v1834, %v1840
    %v1843 = vmul.f32 %v1841, 1.442695
    %v1844 = vpow.pop %v1843
    %v1845 = vmul.f32 %v1842, 1.442695
    %v1846 = vpow.pop %v1845
    %v1847 = vsel %vm409, %v1844, 0.0
    %1848 = vadd.xlane.f32.xlu0 %v1847
    %v1849 = vpop.xlane.xlu0 %1848
    %v1850 = vsel %vm409, %v1846, 0.0
    %1851 = vadd.xlane.f32.xlu0 %v1850
    %v1852 = vpop.xlane.xlu0 %1851
    %v1853 = vrcp.pop %v1849
    %v1854 = vrcp.pop %v1852
    %v1855 = vmul.f32 %v1844, %v1853
    %v1856 = vmul.f32 %v1846, %v1854
    %1857 = vrot.lane.b32.xlu0 %v393, 104
    %v1858 = vpop.permute.xlu0 %1857
    %v1861 = vsel %vm409, %v1855, 0
    %1863 = vmatprep.subr.mxu0 0.0
    %1864 = vmatpush1.msra.mxu0 0.0
    %1865 = vmatprep.subr.mxu0 0.0
    %1866 = vmatpush1.msra.mxu0 0.0
    %1867 = vmatprep.subr.mxu0 0.0
    %1868 = vmatpush1.msra.mxu0 0.0
    %1869 = vmatprep.subr.mxu0 0.0
    %1870 = vmatpush1.msra.mxu0 0.0
    %1871 = vmatprep.subr.mxu0 0.0
    %1872 = vmatpush1.msra.mxu0 0.0
    %1873 = vmatprep.subr.mxu0 0.0
    %1874 = vmatpush1.msra.mxu0 0.0
    %1875 = vmatprep.subr.mxu0 0.0
    %1876 = vmatpush1.msra.mxu0 0.0
    %1877 = vmatprep.subr.mxu0 0.0
    %1878 = vmatpush1.msra.mxu0 0.0
    %1879 = vmatprep.subr.mxu0 0.0
    %1880 = vmatpush1.msra.mxu0 0.0
    %1881 = vmatprep.subr.mxu0 0.0
    %1882 = vmatpush1.msra.mxu0 0.0
    %1883 = vmatprep.subr.mxu0 0.0
    %1884 = vmatpush1.msra.mxu0 0.0
    %1885 = vmatprep.subr.mxu0 0.0
    %1886 = vmatpush1.msra.mxu0 0.0
    %1887 = vmatprep.subr.mxu0 0.0
    %1888 = vmatpush1.msra.mxu0 0.0
    %1889 = vmatprep.subr.mxu0 0.0
    %1890 = vmatpush1.msra.mxu0 0.0
    %1891 = vmatprep.subr.mxu0 0.0
    %1892 = vmatpush1.msra.mxu0 0.0
    %1893 = vmatprep.subr.mxu0 0.0
    %1894 = vmatpush1.msra.mxu0 %v1858
    %1895 = vmatprep.subr.mxu0 0.0
    %1896 = vmatpush2.msra.mxu0 0.0
    %1897 = vmatprep.subr.mxu0 0.0
    %1898 = vmatpush2.msra.mxu0 0.0
    %1899 = vmatprep.subr.mxu0 0.0
    %1900 = vmatpush2.msra.mxu0 0.0
    %1901 = vmatprep.subr.mxu0 0.0
    %1902 = vmatpush2.msra.mxu0 0.0
    %1903 = vmatprep.subr.mxu0 0.0
    %1904 = vmatpush2.msra.mxu0 0.0
    %1905 = vmatprep.subr.mxu0 0.0
    %1906 = vmatpush2.msra.mxu0 0.0
    %1907 = vmatprep.subr.mxu0 0.0
    %1908 = vmatpush2.msra.mxu0 0.0
    %1909 = vmatprep.subr.mxu0 0.0
    %1910 = vmatpush2.msra.mxu0 0.0
    %1911 = vmatprep.subr.mxu0 0.0
    %1912 = vmatpush2.msra.mxu0 0.0
    %1913 = vmatprep.subr.mxu0 0.0
    %1914 = vmatpush2.msra.mxu0 0.0
    %1915 = vmatprep.subr.mxu0 0.0
    %1916 = vmatpush2.msra.mxu0 0.0
    %1917 = vmatprep.subr.mxu0 0.0
    %1918 = vmatpush2.msra.mxu0 0.0
    %1919 = vmatprep.subr.mxu0 0.0
    %1920 = vmatpush2.msra.mxu0 0.0
    %1921 = vmatprep.subr.mxu0 0.0
    %1922 = vmatpush2.msra.mxu0 0.0
    %1923 = vmatprep.subr.mxu0 0.0
    %1924 = vmatpush2.msra.mxu0 0.0
    %1925 = vmatprep.subr.mxu0 0.0
    %1926 = vmatpush2.msra.mxu0 0.0
    %1927 = vmatprep.mubr.f32.mxu0 0.0
    %1928 = vmatmul.mubr.f32.gmra.mxu0 %v1861
    %v1929 = vpop.f32.mrf.mxu0
    %v1930 = vadd.f32 0.0, %v1929
    %v1931 = vpop.f32.mrf.mxu0
    %1932 = vdwg.mxu0
    %1933 = vrot.lane.b32.xlu0 %v398, 104
    %v1934 = vpop.permute.xlu0 %1933
    %v1937 = vsel %vm409, %v1856, 0
    %1939 = vmatprep.subr.mxu0 0.0
    %1940 = vmatpush1.msra.mxu0 0.0
    %1941 = vmatprep.subr.mxu0 0.0
    %1942 = vmatpush1.msra.mxu0 0.0
    %1943 = vmatprep.subr.mxu0 0.0
    %1944 = vmatpush1.msra.mxu0 0.0
    %1945 = vmatprep.subr.mxu0 0.0
    %1946 = vmatpush1.msra.mxu0 0.0
    %1947 = vmatprep.subr.mxu0 0.0
    %1948 = vmatpush1.msra.mxu0 0.0
    %1949 = vmatprep.subr.mxu0 0.0
    %1950 = vmatpush1.msra.mxu0 0.0
    %1951 = vmatprep.subr.mxu0 0.0
    %1952 = vmatpush1.msra.mxu0 0.0
    %1953 = vmatprep.subr.mxu0 0.0
    %1954 = vmatpush1.msra.mxu0 0.0
    %1955 = vmatprep.subr.mxu0 0.0
    %1956 = vmatpush1.msra.mxu0 0.0
    %1957 = vmatprep.subr.mxu0 0.0
    %1958 = vmatpush1.msra.mxu0 0.0
    %1959 = vmatprep.subr.mxu0 0.0
    %1960 = vmatpush1.msra.mxu0 0.0
    %1961 = vmatprep.subr.mxu0 0.0
    %1962 = vmatpush1.msra.mxu0 0.0
    %1963 = vmatprep.subr.mxu0 0.0
    %1964 = vmatpush1.msra.mxu0 0.0
    %1965 = vmatprep.subr.mxu0 0.0
    %1966 = vmatpush1.msra.mxu0 0.0
    %1967 = vmatprep.subr.mxu0 0.0
    %1968 = vmatpush1.msra.mxu0 0.0
    %1969 = vmatprep.subr.mxu0 0.0
    %1970 = vmatpush1.msra.mxu0 %v1934
    %1971 = vmatprep.subr.mxu0 0.0
    %1972 = vmatpush2.msra.mxu0 0.0
    %1973 = vmatprep.subr.mxu0 0.0
    %1974 = vmatpush2.msra.mxu0 0.0
    %1975 = vmatprep.subr.mxu0 0.0
    %1976 = vmatpush2.msra.mxu0 0.0
    %1977 = vmatprep.subr.mxu0 0.0
    %1978 = vmatpush2.msra.mxu0 0.0
    %1979 = vmatprep.subr.mxu0 0.0
    %1980 = vmatpush2.msra.mxu0 0.0
    %1981 = vmatprep.subr.mxu0 0.0
    %1982 = vmatpush2.msra.mxu0 0.0
    %1983 = vmatprep.subr.mxu0 0.0
    %1984 = vmatpush2.msra.mxu0 0.0
    %1985 = vmatprep.subr.mxu0 0.0
    %1986 = vmatpush2.msra.mxu0 0.0
    %1987 = vmatprep.subr.mxu0 0.0
    %1988 = vmatpush2.msra.mxu0 0.0
    %1989 = vmatprep.subr.mxu0 0.0
    %1990 = vmatpush2.msra.mxu0 0.0
    %1991 = vmatprep.subr.mxu0 0.0
    %1992 = vmatpush2.msra.mxu0 0.0
    %1993 = vmatprep.subr.mxu0 0.0
    %1994 = vmatpush2.msra.mxu0 0.0
    %1995 = vmatprep.subr.mxu0 0.0
    %1996 = vmatpush2.msra.mxu0 0.0
    %1997 = vmatprep.subr.mxu0 0.0
    %1998 = vmatpush2.msra.mxu0 0.0
    %1999 = vmatprep.subr.mxu0 0.0
    %2000 = vmatpush2.msra.mxu0 0.0
    %2001 = vmatprep.subr.mxu0 0.0
    %2002 = vmatpush2.msra.mxu0 0.0
    %2003 = vmatprep.mubr.f32.mxu0 0.0
    %2004 = vmatmul.mubr.f32.gmra.mxu0 %v1937
    %v2005 = vpop.f32.mrf.mxu0
    %v2006 = vadd.f32 0.0, %v2005
    %v2007 = vpop.f32.mrf.mxu0
    %2008 = vdwg.mxu0
    %v2010 = vsel %vm409, %v1930, 0
    %v2013 = vsel %vm409, %v2006, 0
    %2015 = vmatprep.subr.mxu0 0.0
    %2016 = vmatpush1.msra.mxu0 0.0
    %2017 = vmatprep.subr.mxu0 0.0
    %2018 = vmatpush1.msra.mxu0 0.0
    %2019 = vmatprep.subr.mxu0 0.0
    %2020 = vmatpush1.msra.mxu0 0.0
    %2021 = vmatprep.subr.mxu0 0.0
    %2022 = vmatpush1.msra.mxu0 0.0
    %2023 = vmatprep.subr.mxu0 0.0
    %2024 = vmatpush1.msra.mxu0 0.0
    %2025 = vmatprep.subr.mxu0 0.0
    %2026 = vmatpush1.msra.mxu0 0.0
    %2027 = vmatprep.subr.mxu0 0.0
    %2028 = vmatpush1.msra.mxu0 0.0
    %2029 = vmatprep.subr.mxu0 0.0
    %2030 = vmatpush1.msra.mxu0 0.0
    %2031 = vmatprep.subr.mxu0 0.0
    %2032 = vmatpush1.msra.mxu0 0.0
    %2033 = vmatprep.subr.mxu0 0.0
    %2034 = vmatpush1.msra.mxu0 0.0
    %2035 = vmatprep.subr.mxu0 0.0
    %2036 = vmatpush1.msra.mxu0 0.0
    %2037 = vmatprep.subr.mxu0 0.0
    %2038 = vmatpush1.msra.mxu0 0.0
    %2039 = vmatprep.subr.mxu0 0.0
    %2040 = vmatpush1.msra.mxu0 0.0
    %2041 = vmatprep.subr.mxu0 0.0
    %2042 = vmatpush1.msra.mxu0 0.0
    %2043 = vmatprep.subr.mxu0 0.0
    %2044 = vmatpush1.msra.mxu0 0.0
    %2045 = vmatprep.subr.mxu0 0.0
    %2046 = vmatpush1.msra.mxu0 %v435
    %2047 = vmatprep.subr.mxu0 0.0
    %2048 = vmatpush2.msra.mxu0 0.0
    %2049 = vmatprep.subr.mxu0 0.0
    %2050 = vmatpush2.msra.mxu0 0.0
    %2051 = vmatprep.subr.mxu0 0.0
    %2052 = vmatpush2.msra.mxu0 0.0
    %2053 = vmatprep.subr.mxu0 0.0
    %2054 = vmatpush2.msra.mxu0 0.0
    %2055 = vmatprep.subr.mxu0 0.0
    %2056 = vmatpush2.msra.mxu0 0.0
    %2057 = vmatprep.subr.mxu0 0.0
    %2058 = vmatpush2.msra.mxu0 0.0
    %2059 = vmatprep.subr.mxu0 0.0
    %2060 = vmatpush2.msra.mxu0 0.0
    %2061 = vmatprep.subr.mxu0 0.0
    %2062 = vmatpush2.msra.mxu0 0.0
    %2063 = vmatprep.subr.mxu0 0.0
    %2064 = vmatpush2.msra.mxu0 0.0
    %2065 = vmatprep.subr.mxu0 0.0
    %2066 = vmatpush2.msra.mxu0 0.0
    %2067 = vmatprep.subr.mxu0 0.0
    %2068 = vmatpush2.msra.mxu0 0.0
    %2069 = vmatprep.subr.mxu0 0.0
    %2070 = vmatpush2.msra.mxu0 0.0
    %2071 = vmatprep.subr.mxu0 0.0
    %2072 = vmatpush2.msra.mxu0 0.0
    %2073 = vmatprep.subr.mxu0 0.0
    %2074 = vmatpush2.msra.mxu0 0.0
    %2075 = vmatprep.subr.mxu0 0.0
    %2076 = vmatpush2.msra.mxu0 0.0
    %2077 = vmatprep.subr.mxu0 0.0
    %2078 = vmatpush2.msra.mxu0 0.0
    %2079 = vmatprep.mubr.f32.mxu0 0.0
    %2080 = vmatmul.mubr.f32.gmra.mxu0 %v2010
    %v2081 = vpop.f32.mrf.mxu0
    %v2082 = vadd.f32 0.0, %v2081
    %v2083 = vpop.f32.mrf.mxu0
    %2084 = vmatprep.mubr.f32.mxu0 0.0
    %2085 = vmatmul.mubr.f32.gmra.mxu0 %v2013
    %v2086 = vpop.f32.mrf.mxu0
    %v2087 = vadd.f32 0.0, %v2086
    %v2088 = vpop.f32.mrf.mxu0
    %2089 = vdwg.mxu0
    %v2090 = vadd.f32 %v1673, %v2082
    %v2091 = vadd.f32 %v1674, %v2087
    %v2092 = vld [vmem:[%s10] sm:$0x1]
    %v2094 = vlaneseq
    %v2095 = vshrl.u32 %v2094, 7
    %v2096 = vsub.s32 0, %v2095
    %v2097 = vrot.slane %v2092, %v2096
    %v2099 = vadd.f32 %v2090, %v2097
    %v2100 = vadd.f32 %v2091, %v2097
    %2101 = vst.msk [vmem:[#allocation14] sm:$0xff] %vm147, %v2099
    %2102 = vst.msk [vmem:[#allocation14 + $0x8] sm:$0xff] %vm147, %v2100
    // Predicated region
    $region74: #{tpu_custom_call.1} parent=1 // pred_check
      _
    $region75: #{tpu_custom_call.1} parent=1 // pred_check_branch
      %2104 = sbr.rel (0) target = $region77
    $region76: #{tpu_custom_call.1} parent=1 // pred_region
      %s2106 = ssub.s32 256, 256
      %2107 = vsyncadd [#allocation4], %s2106
      %s2108 = sshll.u32 [#allocation14], 4
      %s2109 = int_to_ptr.vmem [resolvable:$true] %s2108
      %2114 = dma.vmem_to_hbm [thread:$0]  %s2109, 256, %s11, [#allocation4], 128, 128, 8
    $region77: #{tpu_custom_call.1} parent=1 // pred_fallthru
      _
    // Predicated region
    $region78: #{tpu_custom_call.1} parent=1 // pred_check
      _
    $region79: #{tpu_custom_call.1} parent=1 // pred_check_branch
      %2116 = sbr.rel (0) target = $region81
    $region80: #{tpu_custom_call.1} parent=1 // pred_region
      %2117 = dma.done [#allocation4], 256
    $region81: #{tpu_custom_call.1} parent=1 // pred_fallthru
      _
    %2118 = vsyncpa [#allocation3], 1
    %2119 = vsyncpa [#allocation6], 1
    %2120 = vsyncpa [#allocation9], 1
    %2121 = vsyncpa [#allocation12], 1
    %2122 = vsyncpa [#allocation4], 1

</llo_original>
